<compile_context>
chip_gen: v5e
topology: v5e:2x2
jax: 0.10.0
libtpu: 0.0.40
codegen_flags: <defaults>
</compile_context>

<pallas_src>
import functools

import numpy as np
import jax
import jax.numpy as jnp
from jax.experimental import pallas as pl
from jax.experimental.pallas import tpu as pltpu

F32 = jnp.float32


# ----------------------------------------------------------------------------- fused kernel
def _dual_attention_kernel(
        x_ref, ctx_ref, mask_ref,
        wctx_ref,
        avg_ch_ref, sel_ch_ref, wconv_ref, bconv_ref,
        w1_ref, b1_ref, w2_ref, b2_ref,
        wct_ref, bct_ref, kt_ref,
        avg_sp_ref, sel_sp_ref, perm_ref, wfgh_ref, up_ref,
        out1_ref, out2_ref,
        *, C, C8, h2sq, ch_offs, sp_offs, ch_len, sp_len):
    x = x_ref[0]                                                              # (C, HW)

    # -------- textual attention (masked word softmax) + residual: out_1 = x + results_t --------
    src = jnp.dot(wctx_ref[...], ctx_ref[0], preferred_element_type=F32)      # (C, L)
    scores = jax.lax.dot_general(src, x, (((0,), (0,)), ((), ())),
                                 preferred_element_type=F32)                  # (L, HW)
    scores = jnp.where(mask_ref[0] > 0.5, -1e30, scores)                      # finite mask (no NaN)
    scores = scores - jnp.max(scores, axis=0, keepdims=True)                  # softmax over words
    e = jnp.exp(scores)
    attn_t = e * pl.reciprocal(jnp.sum(e, axis=0, keepdims=True), approx=True)
    out1_ref[0] = x + jnp.dot(src, attn_t, preferred_element_type=F32)        # (C, HW)

    # -------- channel attention --------
    # MaxPool/AvgPool(k=3,s=4) restricted to the 2x2 positions read by the stride-2 1x1 conv.
    mx = x[:, 0:ch_len]
    for d in ch_offs[1:]:
        mx = jnp.maximum(mx, x[:, d:d + ch_len])
    pooled_max = jnp.dot(mx, sel_ch_ref[...], preferred_element_type=F32)     # (C, Q*Q)
    pooled_avg = jnp.dot(x, avg_ch_ref[...], preferred_element_type=F32)      # (C, Q*Q)
    cm = jnp.dot(wconv_ref[...], pooled_max, preferred_element_type=F32) + bconv_ref[...]
    ca = jnp.dot(wconv_ref[...], pooled_avg, preferred_element_type=F32) + bconv_ref[...]

    def mlp(v):                                                               # v: (C8, Q*Q)
        h = b1_ref[...]                                                       # (1, 2*hidden)
        for c8 in range(C8):                                                  # NCHW flatten folded into w1 chunks
            h = h + jnp.dot(v[c8:c8 + 1, :], w1_ref[c8], preferred_element_type=F32)
        h = jnp.maximum(h, 0.0)
        return jnp.dot(h, w2_ref[...], preferred_element_type=F32) + b2_ref[...]

    mlp_out = mlp(cm) + mlp(ca)                                               # (1, C8*h2sq)
    m_cs = jnp.concatenate(
        [mlp_out[:, c8 * h2sq:(c8 + 1) * h2sq] for c8 in range(C8)], axis=0)  # (C8, h2sq)
    proj = jnp.dot(wct_ref[...], m_cs, preferred_element_type=F32)            # ConvT 1x1 -> (C, h2sq)
    s = jnp.dot(proj, kt_ref[...], preferred_element_type=F32) + bct_ref[...]  # stride-2 scatter (C, HW)
    y = pl.reciprocal(1.0 + jnp.exp(-s), approx=True) * x                     # sigmoid gate * x

    # -------- spatial attention on channel-attn output + residual: out_2 = x + results_v --------
    avg = jnp.dot(y, avg_sp_ref[...], preferred_element_type=F32)             # AvgPool(3,2) -> (C, n_avg^2)
    dm = avg[:, 0:sp_len]
    for d in sp_offs[1:]:
        dm = jnp.maximum(dm, avg[:, d:d + sp_len])
    d_cs = jnp.dot(dm, sel_sp_ref[...], preferred_element_type=F32)           # MaxPool(3,2) -> (C, n_down^2)
    fgh = jnp.dot(wfgh_ref[...], d_cs, preferred_element_type=F32)            # stacked f/g/h convs (3C, p)
    f_t = jnp.dot(fgh[0:C], perm_ref[...], preferred_element_type=F32)        # transpose(f, 2, 3)
    sc = f_t * fgh[C:2 * C]
    sc = sc - jnp.max(sc, axis=0, keepdims=True)                              # Softmax() on 4D -> dim=1 (channels)
    es = jnp.exp(sc)
    attn_s = es * pl.reciprocal(jnp.sum(es, axis=0, keepdims=True), approx=True)
    ha = fgh[2 * C:3 * C] * attn_s                                            # (C, n_down^2)
    out2_ref[0] = x + jnp.dot(ha, up_ref[...], preferred_element_type=F32)    # bilinear up + residual


# ----------------------------------------------------------------------------- host-side constants
def _bilinear_matrix(in_size, out_size):
    """nn.Upsample(mode='bilinear', align_corners=False) 1-D weights, shape (out, in)."""
    R = np.zeros((out_size, in_size), np.float32)
    scale = in_size / out_size
    for o in range(out_size):
        src = max((o + 0.5) * scale - 0.5, 0.0)
        i0 = min(int(np.floor(src)), in_size - 1)
        i1 = min(i0 + 1, in_size - 1)
        lam = src - i0
        R[o, i0] += 1.0 - lam
        R[o, i1] += lam
    return R


def _channel_pool_consts(H, W):
    """Pool(k=3,s=4) followed by Conv(k=1,s=2) only touches 3x3 windows starting at rows/cols 8*q."""
    Q = H // 8
    HW = H * W
    offs = tuple(di * W + dj for di in range(3) for dj in range(3))
    length = HW - offs[-1]
    A = np.zeros((HW, Q * Q), np.float32)       # avg pool as one matmul
    S = np.zeros((length, Q * Q), np.float32)   # selection of the shifted-slice maxima
    for i in range(Q):
        for j in range(Q):
            p = i * Q + j
            S[(8 * i) * W + 8 * j, p] = 1.0
            for di in range(3):
                for dj in range(3):
                    A[(8 * i + di) * W + (8 * j + dj), p] = 1.0 / 9.0
    return A, S, offs, length, Q


def _spatial_pool_consts(H, W):
    n_avg = (H - 3) // 2 + 1              # AvgPool(3, 2)
    n_down = (n_avg - 3) // 2 + 1         # MaxPool(3, 2)
    HW = H * W
    P = np.zeros((HW, n_avg * n_avg), np.float32)        # avg pool as one matmul
    for a in range(n_avg):
        for b in range(n_avg):
            for di in range(3):
                for dj in range(3):
                    P[(2 * a + di) * W + (2 * b + dj), a * n_avg + b] = 1.0 / 9.0
    offs = tuple(di * n_avg + dj for di in range(3) for dj in range(3))
    length = n_avg * n_avg - offs[-1]
    S = np.zeros((length, n_down * n_down), np.float32)  # max-pool selection
    T = np.zeros((n_down * n_down, n_down * n_down), np.float32)  # spatial transpose permutation
    for i in range(n_down):
        for j in range(n_down):
            S[(2 * i) * n_avg + 2 * j, i * n_down + j] = 1.0
            T[j * n_down + i, i * n_down + j] = 1.0
    R = _bilinear_matrix(n_down, H)                      # bilinear up as one matmul
    U = np.einsum("ri,cj->ijrc", R, R).reshape(n_down * n_down, HW).astype(np.float32)
    return P, S, T, U, offs, length, n_avg, n_down


def _convt_scatter(H, W):
    """ConvTranspose2d(k=1, s=2, output_padding=1): values land on even (2i, 2j) positions."""
    h2 = H // 2
    Kt = np.zeros((h2 * h2, H * W), np.float32)
    for i in range(h2):
        for j in range(h2):
            Kt[i * h2 + j, (2 * i) * W + 2 * j] = 1.0
    return Kt


# ----------------------------------------------------------------------------- params
def init_params(key, C, H, cdf):
    C8 = C // 8
    hidden = H // 8 * (H // 8) * C // 8
    out_dim = H // 2 * (H // 2) * C // 8
    ks = jax.random.split(key, 12)

    def rnd(k, shape, scale=0.1):
        return (scale * jax.random.normal(k, shape)).astype(F32)

    return {
        "w_ctx": rnd(ks[0], (C, cdf)),            # text conv1x1(cdf -> C), no bias
        "w_conv": rnd(ks[1], (C8, C)),            # Conv2d(C, C//8, k=1, s=2)
        "b_conv": rnd(ks[2], (C8,)),
        "w1": rnd(ks[3], (2 * hidden, hidden)),   # Linear(hidden, 2*hidden)
        "b1": rnd(ks[4], (2 * hidden,)),
        "w2": rnd(ks[5], (out_dim, 2 * hidden)),  # Linear(2*hidden, out_dim)
        "b2": rnd(ks[6], (out_dim,)),
        "w_convt": rnd(ks[7], (C8, C)),           # ConvTranspose2d(C//8, C, k=1, s=2) weight (in, out)
        "b_convt": rnd(ks[8], (C,)),
        "w_f": rnd(ks[9], (C, C)),                # conv1x1, bias=False
        "w_g": rnd(ks[10], (C, C)),
        "w_h": rnd(ks[11], (C, C)),
    }


# ----------------------------------------------------------------------------- forward
def dual_attention_forward(params, x, word_features, mask):
    """x: (B, C, H, W) NCHW ; word_features: (B, cdf, L) ; mask: (B, L) with 1.0 == masked word."""
    B, C, H, W = x.shape
    assert H == W and C % 8 == 0 and H % 8 == 0
    C8 = C // 8
    HW = H * W
    cdf, L = word_features.shape[1], word_features.shape[2]
    hidden = (H // 8) * (H // 8) * C8
    out_dim = (H // 2) * (H // 2) * C8
    h2sq = (H // 2) * (H // 2)

    A_ch, S_ch, ch_offs, ch_len, Q = _channel_pool_consts(H, W)
    P_sp, S_sp, T_sp, U_sp, sp_offs, sp_len, n_avg, n_down = _spatial_pool_consts(H, W)
    Kt = _convt_scatter(H, W)
    QQ = Q * Q

    # kernel inputs: channels-on-sublanes / pixels-on-lanes == native NCHW flatten (no transposes)
    x_flat = x.reshape(B, C, HW).astype(F32)
    ctx = word_features.astype(F32)                       # (B, cdf, L)
    mask_col = mask.astype(F32).reshape(B, L, 1)

    w1_r = params["w1"].T.reshape(C8, QQ, 2 * hidden).astype(F32)   # channel-major flatten folded in
    w_fgh = jnp.concatenate([params["w_f"], params["w_g"], params["w_h"]], axis=0).astype(F32)

    kernel = functools.partial(
        _dual_attention_kernel,
        C=C, C8=C8, h2sq=h2sq,
        ch_offs=ch_offs, sp_offs=sp_offs, ch_len=ch_len, sp_len=sp_len)

    def batch_spec(shape):
        return pl.BlockSpec((1,) + shape, lambda b: (b,) + (0,) * len(shape))

    def const_spec(shape):
        return pl.BlockSpec(shape, lambda b: (0,) * len(shape))

    out1, out2 = pl.pallas_call(
        kernel,
        out_shape=(jax.ShapeDtypeStruct((B, C, HW), F32),
                   jax.ShapeDtypeStruct((B, C, HW), F32)),
        grid=(B,),
        in_specs=[
            batch_spec((C, HW)),                             # x
            batch_spec((cdf, L)),                            # word features
            batch_spec((L, 1)),                              # mask
            const_spec((C, cdf)),                            # text conv1x1
            const_spec((HW, QQ)),                            # channel avg-pool matrix
            const_spec((ch_len, QQ)),                        # channel max-pool selection
            const_spec((C8, C)),                             # conv C -> C/8
            const_spec((C8, 1)),                             # conv bias
            const_spec((C8, QQ, 2 * hidden)),                # linear_1 weight (flatten folded)
            const_spec((1, 2 * hidden)),                     # linear_1 bias
            const_spec((2 * hidden, out_dim)),               # linear_2 weight
            const_spec((1, out_dim)),                        # linear_2 bias
            const_spec((C, C8)),                             # conv_t weight (out, in)
            const_spec((C, 1)),                              # conv_t bias
            const_spec((h2sq, HW)),                          # conv_t stride-2 scatter
            const_spec((HW, n_avg * n_avg)),                 # spatial avg-pool matrix
            const_spec((sp_len, n_down * n_down)),           # spatial max-pool selection
            const_spec((n_down * n_down, n_down * n_down)),  # spatial transpose permutation
            const_spec((3 * C, C)),                          # stacked f/g/h 1x1 convs
            const_spec((n_down * n_down, HW)),               # bilinear upsample matrix
        ],
        out_specs=(batch_spec((C, HW)), batch_spec((C, HW))),
        compiler_params=pltpu.CompilerParams(
            dimension_semantics=("parallel",)),              # batch iters independent (v7x 2-TC)
    )(x_flat, ctx, mask_col,
      params["w_ctx"].astype(F32),
      jnp.asarray(A_ch), jnp.asarray(S_ch),
      params["w_conv"].astype(F32), params["b_conv"].reshape(C8, 1).astype(F32),
      w1_r, params["b1"].reshape(1, -1).astype(F32),
      params["w2"].T.astype(F32), params["b2"].reshape(1, -1).astype(F32),
      params["w_convt"].T.astype(F32), params["b_convt"].reshape(C, 1).astype(F32),
      jnp.asarray(Kt),
      jnp.asarray(P_sp), jnp.asarray(S_sp), jnp.asarray(T_sp),
      w_fgh, jnp.asarray(U_sp))

    out1 = out1.reshape(B, C, H, W)
    out2 = out2.reshape(B, C, H, W)
    return jnp.concatenate([out1, out2], axis=1)             # (B, 2C, H, W)


# ----------------------------------------------------------------------------- main
if __name__ == "__main__":
    key = jax.random.PRNGKey(0)
    B, C, H, W = 2, 16, 16, 16          # hidden_stage_result_size=16, channels=16 (C must be mult of 8)
    cdf, L = 32, 8                      # word_features_size=32, 8 words

    k_in, k_ctx, k_par = jax.random.split(key, 3)
    x = jax.random.normal(k_in, (B, C, H, W), dtype=F32)
    word_features = jax.random.normal(k_ctx, (B, cdf, L), dtype=F32)
    mask = jnp.array([[0, 0, 0, 0, 0, 1, 1, 1],
                      [0, 0, 0, 0, 1, 1, 1, 1]], dtype=F32)  # 1 == masked (pad) word

    params = init_params(k_par, C=C, H=H, cdf=cdf)

    out = jax.jit(dual_attention_forward)(params, x, word_features, mask)
    out = jax.block_until_ready(out)
    assert out.shape == (B, 2 * C, H, W), out.shape
    assert bool(jnp.all(jnp.isfinite(out)))
    print("KERNEL_OK")
</pallas_src>

<mosaic_0001>
module attributes {stable_mosaic.version = 11 : i64} {
  func.func @_dual_attention_kernel(%arg0: i32, %arg1: memref<1x16x256xf32, #tpu.memory_space<vmem>>, %arg2: memref<1x32x8xf32, #tpu.memory_space<vmem>>, %arg3: memref<1x8x1xf32, #tpu.memory_space<vmem>>, %arg4: memref<16x32xf32, #tpu.memory_space<vmem>>, %arg5: memref<256x4xf32, #tpu.memory_space<vmem>>, %arg6: memref<222x4xf32, #tpu.memory_space<vmem>>, %arg7: memref<2x16xf32, #tpu.memory_space<vmem>>, %arg8: memref<2x1xf32, #tpu.memory_space<vmem>>, %arg9: memref<2x4x16xf32, #tpu.memory_space<vmem>>, %arg10: memref<1x16xf32, #tpu.memory_space<vmem>>, %arg11: memref<16x128xf32, #tpu.memory_space<vmem>>, %arg12: memref<1x128xf32, #tpu.memory_space<vmem>>, %arg13: memref<16x2xf32, #tpu.memory_space<vmem>>, %arg14: memref<16x1xf32, #tpu.memory_space<vmem>>, %arg15: memref<64x256xf32, #tpu.memory_space<vmem>>, %arg16: memref<256x49xf32, #tpu.memory_space<vmem>>, %arg17: memref<33x9xf32, #tpu.memory_space<vmem>>, %arg18: memref<9x9xf32, #tpu.memory_space<vmem>>, %arg19: memref<48x16xf32, #tpu.memory_space<vmem>>, %arg20: memref<9x256xf32, #tpu.memory_space<vmem>>, %arg21: memref<1x16x256xf32, #tpu.memory_space<vmem>>, %arg22: memref<1x16x256xf32, #tpu.memory_space<vmem>>) attributes {dimension_semantics = [#tpu.dimension_semantics<parallel>], iteration_bounds = array<i64: 2>, scalar_prefetch = 0 : i64, scratch_operands = 0 : i64, tpu.core_type = #tpu.core_type<tc>, window_params = [{transform_indices = @transform_0, window_bounds = array<i64: 1, 16, 256>}, {transform_indices = @transform_1, window_bounds = array<i64: 1, 32, 8>}, {transform_indices = @transform_2, window_bounds = array<i64: 1, 8, 1>}, {pipeline_mode = #tpu.pipeline_mode<synchronous>, transform_indices = @transform_3, window_bounds = array<i64: 16, 32>}, {pipeline_mode = #tpu.pipeline_mode<synchronous>, transform_indices = @transform_4, window_bounds = array<i64: 256, 4>}, {pipeline_mode = #tpu.pipeline_mode<synchronous>, transform_indices = @transform_5, window_bounds = array<i64: 222, 4>}, {pipeline_mode = #tpu.pipeline_mode<synchronous>, transform_indices = @transform_6, window_bounds = array<i64: 2, 16>}, {pipeline_mode = #tpu.pipeline_mode<synchronous>, transform_indices = @transform_7, window_bounds = array<i64: 2, 1>}, {pipeline_mode = #tpu.pipeline_mode<synchronous>, transform_indices = @transform_8, window_bounds = array<i64: 2, 4, 16>}, {pipeline_mode = #tpu.pipeline_mode<synchronous>, transform_indices = @transform_9, window_bounds = array<i64: 1, 16>}, {pipeline_mode = #tpu.pipeline_mode<synchronous>, transform_indices = @transform_10, window_bounds = array<i64: 16, 128>}, {pipeline_mode = #tpu.pipeline_mode<synchronous>, transform_indices = @transform_11, window_bounds = array<i64: 1, 128>}, {pipeline_mode = #tpu.pipeline_mode<synchronous>, transform_indices = @transform_12, window_bounds = array<i64: 16, 2>}, {pipeline_mode = #tpu.pipeline_mode<synchronous>, transform_indices = @transform_13, window_bounds = array<i64: 16, 1>}, {pipeline_mode = #tpu.pipeline_mode<synchronous>, transform_indices = @transform_14, window_bounds = array<i64: 64, 256>}, {pipeline_mode = #tpu.pipeline_mode<synchronous>, transform_indices = @transform_15, window_bounds = array<i64: 256, 49>}, {pipeline_mode = #tpu.pipeline_mode<synchronous>, transform_indices = @transform_16, window_bounds = array<i64: 33, 9>}, {pipeline_mode = #tpu.pipeline_mode<synchronous>, transform_indices = @transform_17, window_bounds = array<i64: 9, 9>}, {pipeline_mode = #tpu.pipeline_mode<synchronous>, transform_indices = @transform_18, window_bounds = array<i64: 48, 16>}, {pipeline_mode = #tpu.pipeline_mode<synchronous>, transform_indices = @transform_19, window_bounds = array<i64: 9, 256>}, {transform_indices = @transform_20, window_bounds = array<i64: 1, 16, 256>}, {transform_indices = @transform_21, window_bounds = array<i64: 1, 16, 256>}]} {
    %c0 = arith.constant 0 : index
    %c0_0 = arith.constant 0 : index
    %c0_1 = arith.constant 0 : index
    %0 = vector.load %arg1[%c0, %c0_0, %c0_1] : memref<1x16x256xf32, #tpu.memory_space<vmem>>, vector<1x16x256xf32>
    %1 = vector.shape_cast %0 : vector<1x16x256xf32> to vector<16x256xf32>
    %c0_2 = arith.constant 0 : index
    %c0_3 = arith.constant 0 : index
    %2 = vector.load %arg4[%c0_2, %c0_3] : memref<16x32xf32, #tpu.memory_space<vmem>>, vector<16x32xf32>
    %c0_4 = arith.constant 0 : index
    %c0_5 = arith.constant 0 : index
    %c0_6 = arith.constant 0 : index
    %3 = vector.load %arg2[%c0_4, %c0_5, %c0_6] : memref<1x32x8xf32, #tpu.memory_space<vmem>>, vector<1x32x8xf32>
    %4 = vector.shape_cast %3 : vector<1x32x8xf32> to vector<32x8xf32>
    %cst = arith.constant dense<0.000000e+00> : vector<16x8xf32>
    %5 = tpu.matmul %2, %4, %cst {dimension_numbers = #tpu.dot_dimension_numbers<[1], [0], [0], [1], [0, 0, 1, 1], [], []>} : vector<16x32xf32>, vector<32x8xf32>, vector<16x8xf32> -> vector<16x8xf32>
    %cst_7 = arith.constant dense<0.000000e+00> : vector<8x256xf32>
    %6 = tpu.matmul %5, %1, %cst_7 {dimension_numbers = #tpu.dot_dimension_numbers<[0], [0], [1], [1], [0, 1, 1, 1], [], []>} : vector<16x8xf32>, vector<16x256xf32>, vector<8x256xf32> -> vector<8x256xf32>
    %c0_8 = arith.constant 0 : index
    %c0_9 = arith.constant 0 : index
    %c0_10 = arith.constant 0 : index
    %7 = vector.load %arg3[%c0_8, %c0_9, %c0_10] : memref<1x8x1xf32, #tpu.memory_space<vmem>>, vector<1x8x1xf32>
    %8 = vector.shape_cast %7 : vector<1x8x1xf32> to vector<8x1xf32>
    %cst_11 = arith.constant 5.000000e-01 : f32
    %9 = vector.broadcast %cst_11 : f32 to vector<8x1xf32>
    %10 = arith.cmpf ogt, %8, %9 : vector<8x1xf32>
    %cst_12 = arith.constant -1.000000e+30 : f32
    %11 = vector.shape_cast %10 : vector<8x1xi1> to vector<8x1xi1>
    %12 = vector.broadcast %11 : vector<8x1xi1> to vector<8x256xi1>
    %13 = vector.broadcast %cst_12 : f32 to vector<8x256xf32>
    %14 = arith.select %12, %13, %6 : vector<8x256xi1>, vector<8x256xf32>
    %cst_13 = arith.constant dense<0xFF800000> : vector<256xf32>
    %15 = vector.multi_reduction <maximumf>, %14, %cst_13 [0] : vector<8x256xf32> to vector<256xf32>
    %16 = vector.shape_cast %15 : vector<256xf32> to vector<1x256xf32>
    %17 = vector.broadcast %16 : vector<1x256xf32> to vector<8x256xf32>
    %18 = arith.subf %14, %17 : vector<8x256xf32>
    %19 = math.exp %18 : vector<8x256xf32>
    %cst_14 = arith.constant dense<0.000000e+00> : vector<256xf32>
    %20 = vector.multi_reduction <add>, %19, %cst_14 [0] : vector<8x256xf32> to vector<256xf32>
    %21 = vector.shape_cast %20 : vector<256xf32> to vector<1x256xf32>
    %22 = tpu.reciprocal %21 {approx = true} : vector<1x256xf32> -> vector<1x256xf32>
    %23 = vector.broadcast %22 : vector<1x256xf32> to vector<8x256xf32>
    %24 = arith.mulf %19, %23 : vector<8x256xf32>
    %cst_15 = arith.constant dense<0.000000e+00> : vector<16x256xf32>
    %25 = tpu.matmul %5, %24, %cst_15 {dimension_numbers = #tpu.dot_dimension_numbers<[1], [0], [0], [1], [0, 0, 1, 1], [], []>} : vector<16x8xf32>, vector<8x256xf32>, vector<16x256xf32> -> vector<16x256xf32>
    %26 = arith.addf %1, %25 : vector<16x256xf32>
    %c0_16 = arith.constant 0 : index
    %c0_17 = arith.constant 0 : index
    %c0_18 = arith.constant 0 : index
    %27 = vector.load %arg21[%c0_16, %c0_17, %c0_18] : memref<1x16x256xf32, #tpu.memory_space<vmem>>, vector<1x16x256xf32>
    %28 = vector.shape_cast %27 : vector<1x16x256xf32> to vector<16x256xf32>
    %29 = vector.shape_cast %26 : vector<16x256xf32> to vector<1x16x256xf32>
    tpu.vector_store %arg21[%c0_16, %c0_17, %c0_18], %29 {strides = array<i32>} : memref<1x16x256xf32, #tpu.memory_space<vmem>>, vector<1x16x256xf32>,
    %30 = vector.extract_strided_slice %1 {offsets = [0, 0], sizes = [16, 222], strides = [1, 1]} : vector<16x256xf32> to vector<16x222xf32>
    %31 = vector.extract_strided_slice %1 {offsets = [0, 1], sizes = [16, 222], strides = [1, 1]} : vector<16x256xf32> to vector<16x222xf32>
    %32 = arith.maximumf %30, %31 : vector<16x222xf32>
    %33 = vector.extract_strided_slice %1 {offsets = [0, 2], sizes = [16, 222], strides = [1, 1]} : vector<16x256xf32> to vector<16x222xf32>
    %34 = arith.maximumf %32, %33 : vector<16x222xf32>
    %35 = vector.extract_strided_slice %1 {offsets = [0, 16], sizes = [16, 222], strides = [1, 1]} : vector<16x256xf32> to vector<16x222xf32>
    %36 = arith.maximumf %34, %35 : vector<16x222xf32>
    %37 = vector.extract_strided_slice %1 {offsets = [0, 17], sizes = [16, 222], strides = [1, 1]} : vector<16x256xf32> to vector<16x222xf32>
    %38 = arith.maximumf %36, %37 : vector<16x222xf32>
    %39 = vector.extract_strided_slice %1 {offsets = [0, 18], sizes = [16, 222], strides = [1, 1]} : vector<16x256xf32> to vector<16x222xf32>
    %40 = arith.maximumf %38, %39 : vector<16x222xf32>
    %41 = vector.extract_strided_slice %1 {offsets = [0, 32], sizes = [16, 222], strides = [1, 1]} : vector<16x256xf32> to vector<16x222xf32>
    %42 = arith.maximumf %40, %41 : vector<16x222xf32>
    %43 = vector.extract_strided_slice %1 {offsets = [0, 33], sizes = [16, 222], strides = [1, 1]} : vector<16x256xf32> to vector<16x222xf32>
    %44 = arith.maximumf %42, %43 : vector<16x222xf32>
    %45 = vector.extract_strided_slice %1 {offsets = [0, 34], sizes = [16, 222], strides = [1, 1]} : vector<16x256xf32> to vector<16x222xf32>
    %46 = arith.maximumf %44, %45 : vector<16x222xf32>
    %c0_19 = arith.constant 0 : index
    %c0_20 = arith.constant 0 : index
    %47 = vector.load %arg6[%c0_19, %c0_20] : memref<222x4xf32, #tpu.memory_space<vmem>>, vector<222x4xf32>
    %cst_21 = arith.constant dense<0.000000e+00> : vector<16x4xf32>
    %48 = tpu.matmul %46, %47, %cst_21 {dimension_numbers = #tpu.dot_dimension_numbers<[1], [0], [0], [1], [0, 0, 1, 1], [], []>} : vector<16x222xf32>, vector<222x4xf32>, vector<16x4xf32> -> vector<16x4xf32>
    %c0_22 = arith.constant 0 : index
    %c0_23 = arith.constant 0 : index
    %49 = vector.load %arg5[%c0_22, %c0_23] : memref<256x4xf32, #tpu.memory_space<vmem>>, vector<256x4xf32>
    %cst_24 = arith.constant dense<0.000000e+00> : vector<16x4xf32>
    %50 = tpu.matmul %1, %49, %cst_24 {dimension_numbers = #tpu.dot_dimension_numbers<[1], [0], [0], [1], [0, 0, 1, 1], [], []>} : vector<16x256xf32>, vector<256x4xf32>, vector<16x4xf32> -> vector<16x4xf32>
    %c0_25 = arith.constant 0 : index
    %c0_26 = arith.constant 0 : index
    %51 = vector.load %arg7[%c0_25, %c0_26] : memref<2x16xf32, #tpu.memory_space<vmem>>, vector<2x16xf32>
    %cst_27 = arith.constant dense<0.000000e+00> : vector<2x4xf32>
    %52 = tpu.matmul %51, %48, %cst_27 {dimension_numbers = #tpu.dot_dimension_numbers<[1], [0], [0], [1], [0, 0, 1, 1], [], []>} : vector<2x16xf32>, vector<16x4xf32>, vector<2x4xf32> -> vector<2x4xf32>
    %c0_28 = arith.constant 0 : index
    %c0_29 = arith.constant 0 : index
    %53 = vector.load %arg8[%c0_28, %c0_29] : memref<2x1xf32, #tpu.memory_space<vmem>>, vector<2x1xf32>
    %54 = vector.broadcast %53 : vector<2x1xf32> to vector<2x4xf32>
    %55 = arith.addf %52, %54 : vector<2x4xf32>
    %c0_30 = arith.constant 0 : index
    %c0_31 = arith.constant 0 : index
    %56 = vector.load %arg7[%c0_30, %c0_31] : memref<2x16xf32, #tpu.memory_space<vmem>>, vector<2x16xf32>
    %cst_32 = arith.constant dense<0.000000e+00> : vector<2x4xf32>
    %57 = tpu.matmul %56, %50, %cst_32 {dimension_numbers = #tpu.dot_dimension_numbers<[1], [0], [0], [1], [0, 0, 1, 1], [], []>} : vector<2x16xf32>, vector<16x4xf32>, vector<2x4xf32> -> vector<2x4xf32>
    %c0_33 = arith.constant 0 : index
    %c0_34 = arith.constant 0 : index
    %58 = vector.load %arg8[%c0_33, %c0_34] : memref<2x1xf32, #tpu.memory_space<vmem>>, vector<2x1xf32>
    %59 = vector.broadcast %58 : vector<2x1xf32> to vector<2x4xf32>
    %60 = arith.addf %57, %59 : vector<2x4xf32>
    %c0_35 = arith.constant 0 : index
    %c0_36 = arith.constant 0 : index
    %61 = vector.load %arg10[%c0_35, %c0_36] : memref<1x16xf32, #tpu.memory_space<vmem>>, vector<1x16xf32>
    %62 = vector.extract_strided_slice %55 {offsets = [0, 0], sizes = [1, 4], strides = [1, 1]} : vector<2x4xf32> to vector<1x4xf32>
    %c0_37 = arith.constant 0 : index
    %c0_38 = arith.constant 0 : index
    %c0_39 = arith.constant 0 : index
    %63 = vector.load %arg9[%c0_37, %c0_38, %c0_39] : memref<2x4x16xf32, #tpu.memory_space<vmem>>, vector<1x4x16xf32>
    %64 = vector.shape_cast %63 : vector<1x4x16xf32> to vector<4x16xf32>
    %cst_40 = arith.constant dense<0.000000e+00> : vector<1x16xf32>
    %65 = tpu.matmul %62, %64, %cst_40 {dimension_numbers = #tpu.dot_dimension_numbers<[1], [0], [0], [1], [0, 0, 1, 1], [], []>} : vector<1x4xf32>, vector<4x16xf32>, vector<1x16xf32> -> vector<1x16xf32>
    %66 = arith.addf %61, %65 : vector<1x16xf32>
    %67 = vector.extract_strided_slice %55 {offsets = [1, 0], sizes = [1, 4], strides = [1, 1]} : vector<2x4xf32> to vector<1x4xf32>
    %c1 = arith.constant 1 : index
    %c0_41 = arith.constant 0 : index
    %c0_42 = arith.constant 0 : index
    %68 = vector.load %arg9[%c1, %c0_41, %c0_42] : memref<2x4x16xf32, #tpu.memory_space<vmem>>, vector<1x4x16xf32>
    %69 = vector.shape_cast %68 : vector<1x4x16xf32> to vector<4x16xf32>
    %cst_43 = arith.constant dense<0.000000e+00> : vector<1x16xf32>
    %70 = tpu.matmul %67, %69, %cst_43 {dimension_numbers = #tpu.dot_dimension_numbers<[1], [0], [0], [1], [0, 0, 1, 1], [], []>} : vector<1x4xf32>, vector<4x16xf32>, vector<1x16xf32> -> vector<1x16xf32>
    %71 = arith.addf %66, %70 : vector<1x16xf32>
    %cst_44 = arith.constant 0.000000e+00 : f32
    %72 = vector.broadcast %cst_44 : f32 to vector<1x16xf32>
    %73 = arith.maximumf %71, %72 : vector<1x16xf32>
    %c0_45 = arith.constant 0 : index
    %c0_46 = arith.constant 0 : index
    %74 = vector.load %arg11[%c0_45, %c0_46] : memref<16x128xf32, #tpu.memory_space<vmem>>, vector<16x128xf32>
    %cst_47 = arith.constant dense<0.000000e+00> : vector<1x128xf32>
    %75 = tpu.matmul %73, %74, %cst_47 {dimension_numbers = #tpu.dot_dimension_numbers<[1], [0], [0], [1], [0, 0, 1, 1], [], []>} : vector<1x16xf32>, vector<16x128xf32>, vector<1x128xf32> -> vector<1x128xf32>
    %c0_48 = arith.constant 0 : index
    %c0_49 = arith.constant 0 : index
    %76 = vector.load %arg12[%c0_48, %c0_49] : memref<1x128xf32, #tpu.memory_space<vmem>>, vector<1x128xf32>
    %77 = arith.addf %75, %76 : vector<1x128xf32>
    %c0_50 = arith.constant 0 : index
    %c0_51 = arith.constant 0 : index
    %78 = vector.load %arg10[%c0_50, %c0_51] : memref<1x16xf32, #tpu.memory_space<vmem>>, vector<1x16xf32>
    %79 = vector.extract_strided_slice %60 {offsets = [0, 0], sizes = [1, 4], strides = [1, 1]} : vector<2x4xf32> to vector<1x4xf32>
    %c0_52 = arith.constant 0 : index
    %c0_53 = arith.constant 0 : index
    %c0_54 = arith.constant 0 : index
    %80 = vector.load %arg9[%c0_52, %c0_53, %c0_54] : memref<2x4x16xf32, #tpu.memory_space<vmem>>, vector<1x4x16xf32>
    %81 = vector.shape_cast %80 : vector<1x4x16xf32> to vector<4x16xf32>
    %cst_55 = arith.constant dense<0.000000e+00> : vector<1x16xf32>
    %82 = tpu.matmul %79, %81, %cst_55 {dimension_numbers = #tpu.dot_dimension_numbers<[1], [0], [0], [1], [0, 0, 1, 1], [], []>} : vector<1x4xf32>, vector<4x16xf32>, vector<1x16xf32> -> vector<1x16xf32>
    %83 = arith.addf %78, %82 : vector<1x16xf32>
    %84 = vector.extract_strided_slice %60 {offsets = [1, 0], sizes = [1, 4], strides = [1, 1]} : vector<2x4xf32> to vector<1x4xf32>
    %c1_56 = arith.constant 1 : index
    %c0_57 = arith.constant 0 : index
    %c0_58 = arith.constant 0 : index
    %85 = vector.load %arg9[%c1_56, %c0_57, %c0_58] : memref<2x4x16xf32, #tpu.memory_space<vmem>>, vector<1x4x16xf32>
    %86 = vector.shape_cast %85 : vector<1x4x16xf32> to vector<4x16xf32>
    %cst_59 = arith.constant dense<0.000000e+00> : vector<1x16xf32>
    %87 = tpu.matmul %84, %86, %cst_59 {dimension_numbers = #tpu.dot_dimension_numbers<[1], [0], [0], [1], [0, 0, 1, 1], [], []>} : vector<1x4xf32>, vector<4x16xf32>, vector<1x16xf32> -> vector<1x16xf32>
    %88 = arith.addf %83, %87 : vector<1x16xf32>
    %cst_60 = arith.constant 0.000000e+00 : f32
    %89 = vector.broadcast %cst_60 : f32 to vector<1x16xf32>
    %90 = arith.maximumf %88, %89 : vector<1x16xf32>
    %c0_61 = arith.constant 0 : index
    %c0_62 = arith.constant 0 : index
    %91 = vector.load %arg11[%c0_61, %c0_62] : memref<16x128xf32, #tpu.memory_space<vmem>>, vector<16x128xf32>
    %cst_63 = arith.constant dense<0.000000e+00> : vector<1x128xf32>
    %92 = tpu.matmul %90, %91, %cst_63 {dimension_numbers = #tpu.dot_dimension_numbers<[1], [0], [0], [1], [0, 0, 1, 1], [], []>} : vector<1x16xf32>, vector<16x128xf32>, vector<1x128xf32> -> vector<1x128xf32>
    %c0_64 = arith.constant 0 : index
    %c0_65 = arith.constant 0 : index
    %93 = vector.load %arg12[%c0_64, %c0_65] : memref<1x128xf32, #tpu.memory_space<vmem>>, vector<1x128xf32>
    %94 = arith.addf %92, %93 : vector<1x128xf32>
    %95 = arith.addf %77, %94 : vector<1x128xf32>
    %96 = vector.extract_strided_slice %95 {offsets = [0, 0], sizes = [1, 64], strides = [1, 1]} : vector<1x128xf32> to vector<1x64xf32>
    %97 = vector.extract_strided_slice %95 {offsets = [0, 64], sizes = [1, 64], strides = [1, 1]} : vector<1x128xf32> to vector<1x64xf32>
    %98 = tpu.concatenate %96, %97 in 0 : vector<1x64xf32>, vector<1x64xf32> -> vector<2x64xf32>
    %c0_66 = arith.constant 0 : index
    %c0_67 = arith.constant 0 : index
    %99 = vector.load %arg13[%c0_66, %c0_67] : memref<16x2xf32, #tpu.memory_space<vmem>>, vector<16x2xf32>
    %cst_68 = arith.constant dense<0.000000e+00> : vector<16x64xf32>
    %100 = tpu.matmul %99, %98, %cst_68 {dimension_numbers = #tpu.dot_dimension_numbers<[1], [0], [0], [1], [0, 0, 1, 1], [], []>} : vector<16x2xf32>, vector<2x64xf32>, vector<16x64xf32> -> vector<16x64xf32>
    %c0_69 = arith.constant 0 : index
    %c0_70 = arith.constant 0 : index
    %101 = vector.load %arg15[%c0_69, %c0_70] : memref<64x256xf32, #tpu.memory_space<vmem>>, vector<64x256xf32>
    %cst_71 = arith.constant dense<0.000000e+00> : vector<16x256xf32>
    %102 = tpu.matmul %100, %101, %cst_71 {dimension_numbers = #tpu.dot_dimension_numbers<[1], [0], [0], [1], [0, 0, 1, 1], [], []>} : vector<16x64xf32>, vector<64x256xf32>, vector<16x256xf32> -> vector<16x256xf32>
    %c0_72 = arith.constant 0 : index
    %c0_73 = arith.constant 0 : index
    %103 = vector.load %arg14[%c0_72, %c0_73] : memref<16x1xf32, #tpu.memory_space<vmem>>, vector<16x1xf32>
    %104 = vector.broadcast %103 : vector<16x1xf32> to vector<16x256xf32>
    %105 = arith.addf %102, %104 : vector<16x256xf32>
    %cst_74 = arith.constant 0.000000e+00 : f32
    %106 = vector.broadcast %cst_74 : f32 to vector<16x256xf32>
    %107 = arith.subf %106, %105 : vector<16x256xf32>
    %108 = math.exp %107 : vector<16x256xf32>
    %cst_75 = arith.constant 1.000000e+00 : f32
    %109 = vector.broadcast %cst_75 : f32 to vector<16x256xf32>
    %110 = arith.addf %109, %108 : vector<16x256xf32>
    %111 = tpu.reciprocal %110 {approx = true} : vector<16x256xf32> -> vector<16x256xf32>
    %112 = arith.mulf %111, %1 : vector<16x256xf32>
    %c0_76 = arith.constant 0 : index
    %c0_77 = arith.constant 0 : index
    %113 = vector.load %arg16[%c0_76, %c0_77] : memref<256x49xf32, #tpu.memory_space<vmem>>, vector<256x49xf32>
    %cst_78 = arith.constant dense<0.000000e+00> : vector<16x49xf32>
    %114 = tpu.matmul %112, %113, %cst_78 {dimension_numbers = #tpu.dot_dimension_numbers<[1], [0], [0], [1], [0, 0, 1, 1], [], []>} : vector<16x256xf32>, vector<256x49xf32>, vector<16x49xf32> -> vector<16x49xf32>
    %115 = vector.extract_strided_slice %114 {offsets = [0, 0], sizes = [16, 33], strides = [1, 1]} : vector<16x49xf32> to vector<16x33xf32>
    %116 = vector.extract_strided_slice %114 {offsets = [0, 1], sizes = [16, 33], strides = [1, 1]} : vector<16x49xf32> to vector<16x33xf32>
    %117 = arith.maximumf %115, %116 : vector<16x33xf32>
    %118 = vector.extract_strided_slice %114 {offsets = [0, 2], sizes = [16, 33], strides = [1, 1]} : vector<16x49xf32> to vector<16x33xf32>
    %119 = arith.maximumf %117, %118 : vector<16x33xf32>
    %120 = vector.extract_strided_slice %114 {offsets = [0, 7], sizes = [16, 33], strides = [1, 1]} : vector<16x49xf32> to vector<16x33xf32>
    %121 = arith.maximumf %119, %120 : vector<16x33xf32>
    %122 = vector.extract_strided_slice %114 {offsets = [0, 8], sizes = [16, 33], strides = [1, 1]} : vector<16x49xf32> to vector<16x33xf32>
    %123 = arith.maximumf %121, %122 : vector<16x33xf32>
    %124 = vector.extract_strided_slice %114 {offsets = [0, 9], sizes = [16, 33], strides = [1, 1]} : vector<16x49xf32> to vector<16x33xf32>
    %125 = arith.maximumf %123, %124 : vector<16x33xf32>
    %126 = vector.extract_strided_slice %114 {offsets = [0, 14], sizes = [16, 33], strides = [1, 1]} : vector<16x49xf32> to vector<16x33xf32>
    %127 = arith.maximumf %125, %126 : vector<16x33xf32>
    %128 = vector.extract_strided_slice %114 {offsets = [0, 15], sizes = [16, 33], strides = [1, 1]} : vector<16x49xf32> to vector<16x33xf32>
    %129 = arith.maximumf %127, %128 : vector<16x33xf32>
    %130 = vector.extract_strided_slice %114 {offsets = [0, 16], sizes = [16, 33], strides = [1, 1]} : vector<16x49xf32> to vector<16x33xf32>
    %131 = arith.maximumf %129, %130 : vector<16x33xf32>
    %c0_79 = arith.constant 0 : index
    %c0_80 = arith.constant 0 : index
    %132 = vector.load %arg17[%c0_79, %c0_80] : memref<33x9xf32, #tpu.memory_space<vmem>>, vector<33x9xf32>
    %cst_81 = arith.constant dense<0.000000e+00> : vector<16x9xf32>
    %133 = tpu.matmul %131, %132, %cst_81 {dimension_numbers = #tpu.dot_dimension_numbers<[1], [0], [0], [1], [0, 0, 1, 1], [], []>} : vector<16x33xf32>, vector<33x9xf32>, vector<16x9xf32> -> vector<16x9xf32>
    %c0_82 = arith.constant 0 : index
    %c0_83 = arith.constant 0 : index
    %134 = vector.load %arg19[%c0_82, %c0_83] : memref<48x16xf32, #tpu.memory_space<vmem>>, vector<48x16xf32>
    %cst_84 = arith.constant dense<0.000000e+00> : vector<48x9xf32>
    %135 = tpu.matmul %134, %133, %cst_84 {dimension_numbers = #tpu.dot_dimension_numbers<[1], [0], [0], [1], [0, 0, 1, 1], [], []>} : vector<48x16xf32>, vector<16x9xf32>, vector<48x9xf32> -> vector<48x9xf32>
    %136 = vector.extract_strided_slice %135 {offsets = [0, 0], sizes = [16, 9], strides = [1, 1]} : vector<48x9xf32> to vector<16x9xf32>
    %c0_85 = arith.constant 0 : index
    %c0_86 = arith.constant 0 : index
    %137 = vector.load %arg18[%c0_85, %c0_86] : memref<9x9xf32, #tpu.memory_space<vmem>>, vector<9x9xf32>
    %cst_87 = arith.constant dense<0.000000e+00> : vector<16x9xf32>
    %138 = tpu.matmul %136, %137, %cst_87 {dimension_numbers = #tpu.dot_dimension_numbers<[1], [0], [0], [1], [0, 0, 1, 1], [], []>} : vector<16x9xf32>, vector<9x9xf32>, vector<16x9xf32> -> vector<16x9xf32>
    %139 = vector.extract_strided_slice %135 {offsets = [16, 0], sizes = [16, 9], strides = [1, 1]} : vector<48x9xf32> to vector<16x9xf32>
    %140 = arith.mulf %138, %139 : vector<16x9xf32>
    %cst_88 = arith.constant dense<0xFF800000> : vector<9xf32>
    %141 = vector.multi_reduction <maximumf>, %140, %cst_88 [0] : vector<16x9xf32> to vector<9xf32>
    %142 = vector.shape_cast %141 : vector<9xf32> to vector<1x9xf32>
    %143 = vector.broadcast %142 : vector<1x9xf32> to vector<16x9xf32>
    %144 = arith.subf %140, %143 : vector<16x9xf32>
    %145 = math.exp %144 : vector<16x9xf32>
    %cst_89 = arith.constant dense<0.000000e+00> : vector<9xf32>
    %146 = vector.multi_reduction <add>, %145, %cst_89 [0] : vector<16x9xf32> to vector<9xf32>
    %147 = vector.shape_cast %146 : vector<9xf32> to vector<1x9xf32>
    %148 = tpu.reciprocal %147 {approx = true} : vector<1x9xf32> -> vector<1x9xf32>
    %149 = vector.broadcast %148 : vector<1x9xf32> to vector<16x9xf32>
    %150 = arith.mulf %145, %149 : vector<16x9xf32>
    %151 = vector.extract_strided_slice %135 {offsets = [32, 0], sizes = [16, 9], strides = [1, 1]} : vector<48x9xf32> to vector<16x9xf32>
    %152 = arith.mulf %151, %150 : vector<16x9xf32>
    %c0_90 = arith.constant 0 : index
    %c0_91 = arith.constant 0 : index
    %153 = vector.load %arg20[%c0_90, %c0_91] : memref<9x256xf32, #tpu.memory_space<vmem>>, vector<9x256xf32>
    %cst_92 = arith.constant dense<0.000000e+00> : vector<16x256xf32>
    %154 = tpu.matmul %152, %153, %cst_92 {dimension_numbers = #tpu.dot_dimension_numbers<[1], [0], [0], [1], [0, 0, 1, 1], [], []>} : vector<16x9xf32>, vector<9x256xf32>, vector<16x256xf32> -> vector<16x256xf32>
    %155 = arith.addf %1, %154 : vector<16x256xf32>
    %c0_93 = arith.constant 0 : index
    %c0_94 = arith.constant 0 : index
    %c0_95 = arith.constant 0 : index
    %156 = vector.load %arg22[%c0_93, %c0_94, %c0_95] : memref<1x16x256xf32, #tpu.memory_space<vmem>>, vector<1x16x256xf32>
    %157 = vector.shape_cast %156 : vector<1x16x256xf32> to vector<16x256xf32>
    %158 = vector.shape_cast %155 : vector<16x256xf32> to vector<1x16x256xf32>
    tpu.vector_store %arg22[%c0_93, %c0_94, %c0_95], %158 {strides = array<i32>} : memref<1x16x256xf32, #tpu.memory_space<vmem>>, vector<1x16x256xf32>,
    return
  }
  func.func @transform_0(%arg0: i32) -> (i32, i32, i32) {
    %c0_i32 = arith.constant 0 : i32
    %c0_i32_0 = arith.constant 0 : i32
    %c0_i32_1 = arith.constant 0 : i32
    return %arg0, %c0_i32, %c0_i32_0 : i32, i32, i32
  }
  func.func @transform_1(%arg0: i32) -> (i32, i32, i32) {
    %c0_i32 = arith.constant 0 : i32
    %c0_i32_0 = arith.constant 0 : i32
    %c0_i32_1 = arith.constant 0 : i32
    return %arg0, %c0_i32, %c0_i32_0 : i32, i32, i32
  }
  func.func @transform_2(%arg0: i32) -> (i32, i32, i32) {
    %c0_i32 = arith.constant 0 : i32
    %c0_i32_0 = arith.constant 0 : i32
    %c0_i32_1 = arith.constant 0 : i32
    return %arg0, %c0_i32, %c0_i32_0 : i32, i32, i32
  }
  func.func @transform_3(%arg0: i32) -> (i32, i32) {
    %c0_i32 = arith.constant 0 : i32
    %c0_i32_0 = arith.constant 0 : i32
    %c0_i32_1 = arith.constant 0 : i32
    return %c0_i32, %c0_i32_0 : i32, i32
  }
  func.func @transform_4(%arg0: i32) -> (i32, i32) {
    %c0_i32 = arith.constant 0 : i32
    %c0_i32_0 = arith.constant 0 : i32
    %c0_i32_1 = arith.constant 0 : i32
    return %c0_i32, %c0_i32_0 : i32, i32
  }
  func.func @transform_5(%arg0: i32) -> (i32, i32) {
    %c0_i32 = arith.constant 0 : i32
    %c0_i32_0 = arith.constant 0 : i32
    %c0_i32_1 = arith.constant 0 : i32
    return %c0_i32, %c0_i32_0 : i32, i32
  }
  func.func @transform_6(%arg0: i32) -> (i32, i32) {
    %c0_i32 = arith.constant 0 : i32
    %c0_i32_0 = arith.constant 0 : i32
    %c0_i32_1 = arith.constant 0 : i32
    return %c0_i32, %c0_i32_0 : i32, i32
  }
  func.func @transform_7(%arg0: i32) -> (i32, i32) {
    %c0_i32 = arith.constant 0 : i32
    %c0_i32_0 = arith.constant 0 : i32
    %c0_i32_1 = arith.constant 0 : i32
    return %c0_i32, %c0_i32_0 : i32, i32
  }
  func.func @transform_8(%arg0: i32) -> (i32, i32, i32) {
    %c0_i32 = arith.constant 0 : i32
    %c0_i32_0 = arith.constant 0 : i32
    %c0_i32_1 = arith.constant 0 : i32
    %c0_i32_2 = arith.constant 0 : i32
    return %c0_i32, %c0_i32_0, %c0_i32_1 : i32, i32, i32
  }
  func.func @transform_9(%arg0: i32) -> (i32, i32) {
    %c0_i32 = arith.constant 0 : i32
    %c0_i32_0 = arith.constant 0 : i32
    %c0_i32_1 = arith.constant 0 : i32
    return %c0_i32, %c0_i32_0 : i32, i32
  }
  func.func @transform_10(%arg0: i32) -> (i32, i32) {
    %c0_i32 = arith.constant 0 : i32
    %c0_i32_0 = arith.constant 0 : i32
    %c0_i32_1 = arith.constant 0 : i32
    return %c0_i32, %c0_i32_0 : i32, i32
  }
  func.func @transform_11(%arg0: i32) -> (i32, i32) {
    %c0_i32 = arith.constant 0 : i32
    %c0_i32_0 = arith.constant 0 : i32
    %c0_i32_1 = arith.constant 0 : i32
    return %c0_i32, %c0_i32_0 : i32, i32
  }
  func.func @transform_12(%arg0: i32) -> (i32, i32) {
    %c0_i32 = arith.constant 0 : i32
    %c0_i32_0 = arith.constant 0 : i32
    %c0_i32_1 = arith.constant 0 : i32
    return %c0_i32, %c0_i32_0 : i32, i32
  }
  func.func @transform_13(%arg0: i32) -> (i32, i32) {
    %c0_i32 = arith.constant 0 : i32
    %c0_i32_0 = arith.constant 0 : i32
    %c0_i32_1 = arith.constant 0 : i32
    return %c0_i32, %c0_i32_0 : i32, i32
  }
  func.func @transform_14(%arg0: i32) -> (i32, i32) {
    %c0_i32 = arith.constant 0 : i32
    %c0_i32_0 = arith.constant 0 : i32
    %c0_i32_1 = arith.constant 0 : i32
    return %c0_i32, %c0_i32_0 : i32, i32
  }
  func.func @transform_15(%arg0: i32) -> (i32, i32) {
    %c0_i32 = arith.constant 0 : i32
    %c0_i32_0 = arith.constant 0 : i32
    %c0_i32_1 = arith.constant 0 : i32
    return %c0_i32, %c0_i32_0 : i32, i32
  }
  func.func @transform_16(%arg0: i32) -> (i32, i32) {
    %c0_i32 = arith.constant 0 : i32
    %c0_i32_0 = arith.constant 0 : i32
    %c0_i32_1 = arith.constant 0 : i32
    return %c0_i32, %c0_i32_0 : i32, i32
  }
  func.func @transform_17(%arg0: i32) -> (i32, i32) {
    %c0_i32 = arith.constant 0 : i32
    %c0_i32_0 = arith.constant 0 : i32
    %c0_i32_1 = arith.constant 0 : i32
    return %c0_i32, %c0_i32_0 : i32, i32
  }
  func.func @transform_18(%arg0: i32) -> (i32, i32) {
    %c0_i32 = arith.constant 0 : i32
    %c0_i32_0 = arith.constant 0 : i32
    %c0_i32_1 = arith.constant 0 : i32
    return %c0_i32, %c0_i32_0 : i32, i32
  }
  func.func @transform_19(%arg0: i32) -> (i32, i32) {
    %c0_i32 = arith.constant 0 : i32
    %c0_i32_0 = arith.constant 0 : i32
    %c0_i32_1 = arith.constant 0 : i32
    return %c0_i32, %c0_i32_0 : i32, i32
  }
  func.func @transform_20(%arg0: i32) -> (i32, i32, i32) {
    %c0_i32 = arith.constant 0 : i32
    %c0_i32_0 = arith.constant 0 : i32
    %c0_i32_1 = arith.constant 0 : i32
    return %arg0, %c0_i32, %c0_i32_0 : i32, i32, i32
  }
  func.func @transform_21(%arg0: i32) -> (i32, i32, i32) {
    %c0_i32 = arith.constant 0 : i32
    %c0_i32_0 = arith.constant 0 : i32
    %c0_i32_1 = arith.constant 0 : i32
    return %arg0, %c0_i32, %c0_i32_0 : i32, i32, i32
  }
}

</mosaic_0001>

<llo_original>
// kernel: dual_attention_forward.1
$region0: #{dual_attention_forward.1}
  #allocation0 [shape = 'u32[]', space=smem, size = 0x4, offset = 0x4, fixed_abs, tag = 'smem constant byte address 0x4 - core index']
  #allocation1 [shape = 'u32[72,128]{1,0:T(1,128)}', space=vmem, size = 0x9000, scoped, tag = 'internal scratch']
  %s0 = inlined_call_operand.vmem [shape: f32[2,16,256], index: 0, kind: input, shape index: {}]
  %s1 = inlined_call_operand.vmem [shape: f32[2,32,8], index: 1, kind: input, shape index: {}]
  %s2 = inlined_call_operand.vmem [shape: f32[2,8,1], index: 2, kind: input, shape index: {}]
  %s3 = inlined_call_operand.hbm [shape: f32[16,32], index: 3, kind: input, shape index: {}]
  %s4 = inlined_call_operand.vmem [shape: f32[256,4], index: 4, kind: input, shape index: {}]
  %s5 = inlined_call_operand.vmem [shape: f32[222,4], index: 5, kind: input, shape index: {}]
  %s6 = inlined_call_operand.vmem [shape: f32[2,16], index: 6, kind: input, shape index: {}]
  %s7 = inlined_call_operand.vmem [shape: f32[2,1], index: 7, kind: input, shape index: {}]
  %s8 = inlined_call_operand.hbm [shape: f32[2,4,16], index: 8, kind: input, shape index: {}]
  %s9 = inlined_call_operand.vmem [shape: f32[1,16], index: 9, kind: input, shape index: {}]
  %s10 = inlined_call_operand.hbm [shape: f32[16,128], index: 10, kind: input, shape index: {}]
  %s11 = inlined_call_operand.vmem [shape: f32[1,128], index: 11, kind: input, shape index: {}]
  %s12 = inlined_call_operand.vmem [shape: f32[16,2], index: 12, kind: input, shape index: {}]
  %s13 = inlined_call_operand.vmem [shape: f32[16,1], index: 13, kind: input, shape index: {}]
  %s14 = inlined_call_operand.hbm [shape: f32[64,256], index: 14, kind: input, shape index: {}]
  %s15 = inlined_call_operand.vmem [shape: f32[256,49], index: 15, kind: input, shape index: {}]
  %s16 = inlined_call_operand.hbm [shape: f32[33,9], index: 16, kind: input, shape index: {}]
  %s17 = inlined_call_operand.vmem [shape: f32[9,9], index: 17, kind: input, shape index: {}]
  %s18 = inlined_call_operand.vmem [shape: f32[48,16], index: 18, kind: input, shape index: {}]
  %s19 = inlined_call_operand.hbm [shape: f32[9,256], index: 19, kind: input, shape index: {}]
  %s20 = inlined_call_operand.vmem [shape: f32[2,16,256], index: 20, kind: output, shape index: {0}]
  %s21 = inlined_call_operand.vmem [shape: f32[2,16,256], index: 21, kind: output, shape index: {1}]
  %22 = xla_tuple %s20, %s21
  %s23 = sld [smem:[#allocation0]]
  $region145: #{dual_attention_forward.1} parent=0
    _
  %s25 = ssub.s32 1, %s23
  %s26 = scalar_select 0, %s25, %s23
  $region1: #{dual_attention_forward.1} parent=0
    #allocation2 [shape = 'u8[8192]{0}', space=vmem, size = 0x2000, scoped, tag = 'input window, operand 3, single buffered']
    #allocation3 [shape = 's32[2]{0}', space=sflag, size = 0x8, scoped, tag = 'scoped memory for dual_attention_forward.1']
    #allocation4 [shape = 'u8[4096]{0}', space=vmem, size = 0x1000, scoped, tag = 'input window, operand 8, single buffered']
    #allocation5 [shape = 's32[1]{0}', space=sflag, size = 0x4, scoped, tag = 'scoped memory for dual_attention_forward.1']
    #allocation6 [shape = 'u8[8192]{0}', space=vmem, size = 0x2000, scoped, tag = 'input window, operand 10, single buffered']
    #allocation7 [shape = 'u8[65536]{0}', space=vmem, size = 0x10000, scoped, tag = 'input window, operand 14, single buffered']
    #allocation8 [shape = 's32[1]{0}', space=sflag, size = 0x4, scoped, tag = 'scoped memory for dual_attention_forward.1']
    #allocation9 [shape = 'u8[20480]{0}', space=vmem, size = 0x5000, scoped, tag = 'input window, operand 16, single buffered']
    #allocation10 [shape = 'u8[16384]{0}', space=vmem, size = 0x4000, scoped, tag = 'input window, operand 19, single buffered']
    #allocation11 [shape = 's32[1]{0}', space=sflag, size = 0x4, scoped, tag = 'scoped memory for dual_attention_forward.1']
    %27 = vsyncpa [#allocation3], 0
    %28 = vsyncpa [#allocation5], 0
    %29 = vsyncpa [#allocation8], 0
    %30 = vsyncpa [#allocation11], 0
    loop: start=0, step=1, limit=4
    $region2: #{dual_attention_forward.1} parent=1 // loop_pre_header
      _
    $region3: #{dual_attention_forward.1} parent=1 // loop_header
      %s32 = sphi 0, %s36
      %p33 = scmp.ge.s32.totalorder %s32, 4
      %s42 = sphi 0, %s44
      %s45 = sphi 0, %s42
      %s46 = sphi 0, %s45
      %s62 = sphi 0, %s46
      %s68 = sphi 0, %s70
      %s71 = sphi 0, %s68
      %s72 = sphi 0, %s71
      %s88 = sphi 0, %s72
      %s94 = sphi 0, %s96
      %s97 = sphi 0, %s94
      %s98 = sphi 0, %s97
      %s114 = sphi 0, %s98
      %s118 = sphi 0, %s118
      %s120 = sphi 0, %s118
      %s121 = sphi 0, %s120
      %s135 = sphi 0, %s121
      %s139 = sphi 0, %s139
      %s141 = sphi 0, %s139
      %s142 = sphi 0, %s141
      %s156 = sphi 0, %s142
      %s160 = sphi 0, %s160
      %s162 = sphi 0, %s160
      %s163 = sphi 0, %s162
      %s177 = sphi 0, %s163
      %s181 = sphi 0, %s181
      %s183 = sphi 0, %s181
      %s184 = sphi 0, %s183
      %s198 = sphi 0, %s184
      %s202 = sphi 0, %s202
      %s204 = sphi 0, %s202
      %s205 = sphi 0, %s204
      %s219 = sphi 0, %s205
      %s223 = sphi 0, %s223
      %s225 = sphi 0, %s223
      %s226 = sphi 0, %s225
      %s240 = sphi 0, %s226
      %s244 = sphi 0, %s244
      %s246 = sphi 0, %s244
      %s247 = sphi 0, %s246
      %s261 = sphi 0, %s247
      %s265 = sphi 0, %s265
      %s267 = sphi 0, %s265
      %s268 = sphi 0, %s267
      %s282 = sphi 0, %s268
      %s286 = sphi 0, %s286
      %s288 = sphi 0, %s286
      %s289 = sphi 0, %s288
      %s303 = sphi 0, %s289
      %s307 = sphi 0, %s307
      %s309 = sphi 0, %s307
      %s310 = sphi 0, %s309
      %s324 = sphi 0, %s310
      %s328 = sphi 0, %s328
      %s330 = sphi 0, %s328
      %s331 = sphi 0, %s330
      %s345 = sphi 0, %s331
      %s349 = sphi 0, %s349
      %s351 = sphi 0, %s349
      %s352 = sphi 0, %s351
      %s366 = sphi 0, %s352
      %s370 = sphi 0, %s370
      %s372 = sphi 0, %s370
      %s373 = sphi 0, %s372
      %s387 = sphi 0, %s373
      %s391 = sphi 0, %s391
      %s393 = sphi 0, %s391
      %s394 = sphi 0, %s393
      %s408 = sphi 0, %s394
      %s412 = sphi 0, %s412
      %s414 = sphi 0, %s412
      %s415 = sphi 0, %s414
      %s429 = sphi 0, %s415
      %s433 = sphi 0, %s433
      %s435 = sphi 0, %s433
      %s436 = sphi 0, %s435
      %s450 = sphi 0, %s436
      %s454 = sphi 0, %s454
      %s456 = sphi 0, %s454
      %s457 = sphi 0, %s456
      %s471 = sphi 0, %s457
      %s477 = sphi 0, %s479
      %s480 = sphi 0, %s477
      %s481 = sphi 0, %s480
      %s497 = sphi 0, %s481
      %s503 = sphi 0, %s505
      %s506 = sphi 0, %s503
      %s507 = sphi 0, %s506
      %s523 = sphi 0, %s507
    $region4: #{dual_attention_forward.1} parent=1 // loop_header_branch
      %35 = sbr.rel (%p33) target = $region8
    $region5: #{dual_attention_forward.1} parent=1 // loop_body
      %s37 = ssub.s32 %s32, 1
      %s38 = ssub.s32 %s32, 2
      %s39 = sadd.s32 %s32, 1
      %s40 = ssub.s32 %s32, %s39
      %p41 = scmp.eq.s32.totalorder %s40, 0
      %s43 = sadd.s32 %s42, 1
      %s44 = scalar_select %p41, %s42, %s43
      %p47 = pneg %p41
      %p48 = scmp.eq.s32.totalorder %s32, 1
      %p49 = por %p47, %p48
      %p50 = scmp.ne.s32.totalorder %s42, %s45
      %p51 = scmp.eq.s32.totalorder %s32, 0
      %p52 = por %p50, %p51
      %p53 = scmp.ne.s32.totalorder %s42, %s45
      %p54 = scmp.eq.s32.totalorder %s37, 1
      %p55 = por %p53, %p54
      %p56 = scmp.ne.s32.totalorder %s45, %s46
      %p57 = scmp.eq.s32.totalorder %s37, 0
      %p58 = por %p56, %p57
      %p59 = scmp.ne.s32.totalorder %s45, %s46
      %p60 = scmp.eq.s32.totalorder %s38, 1
      %p61 = por %p59, %p60
      %p63 = scmp.ne.s32.totalorder %s46, %s62
      %p64 = scmp.eq.s32.totalorder %s38, 0
      %p65 = por %p63, %p64
      %s66 = ssub.s32 %s32, %s39
      %p67 = scmp.eq.s32.totalorder %s66, 0
      %s69 = sadd.s32 %s68, 1
      %s70 = scalar_select %p67, %s68, %s69
      %p73 = pneg %p67
      %p74 = scmp.eq.s32.totalorder %s32, 1
      %p75 = por %p73, %p74
      %p76 = scmp.ne.s32.totalorder %s68, %s71
      %p77 = scmp.eq.s32.totalorder %s32, 0
      %p78 = por %p76, %p77
      %p79 = scmp.ne.s32.totalorder %s68, %s71
      %p80 = scmp.eq.s32.totalorder %s37, 1
      %p81 = por %p79, %p80
      %p82 = scmp.ne.s32.totalorder %s71, %s72
      %p83 = scmp.eq.s32.totalorder %s37, 0
      %p84 = por %p82, %p83
      %p85 = scmp.ne.s32.totalorder %s71, %s72
      %p86 = scmp.eq.s32.totalorder %s38, 1
      %p87 = por %p85, %p86
      %p89 = scmp.ne.s32.totalorder %s72, %s88
      %p90 = scmp.eq.s32.totalorder %s38, 0
      %p91 = por %p89, %p90
      %s92 = ssub.s32 %s32, %s39
      %p93 = scmp.eq.s32.totalorder %s92, 0
      %s95 = sadd.s32 %s94, 1
      %s96 = scalar_select %p93, %s94, %s95
      %p99 = pneg %p93
      %p100 = scmp.eq.s32.totalorder %s32, 1
      %p101 = por %p99, %p100
      %p102 = scmp.ne.s32.totalorder %s94, %s97
      %p103 = scmp.eq.s32.totalorder %s32, 0
      %p104 = por %p102, %p103
      %p105 = scmp.ne.s32.totalorder %s94, %s97
      %p106 = scmp.eq.s32.totalorder %s37, 1
      %p107 = por %p105, %p106
      %p108 = scmp.ne.s32.totalorder %s97, %s98
      %p109 = scmp.eq.s32.totalorder %s37, 0
      %p110 = por %p108, %p109
      %p111 = scmp.ne.s32.totalorder %s97, %s98
      %p112 = scmp.eq.s32.totalorder %s38, 1
      %p113 = por %p111, %p112
      %p115 = scmp.ne.s32.totalorder %s98, %s114
      %p116 = scmp.eq.s32.totalorder %s38, 0
      %p117 = por %p115, %p116
      %s119 = sadd.s32 %s118, 1
      %p122 = scmp.eq.s32.totalorder %s32, 1
      %p123 = scmp.ne.s32.totalorder %s118, %s120
      %p124 = scmp.eq.s32.totalorder %s32, 0
      %p125 = por %p123, %p124
      %p126 = scmp.ne.s32.totalorder %s118, %s120
      %p127 = scmp.eq.s32.totalorder %s37, 1
      %p128 = por %p126, %p127
      %p129 = scmp.ne.s32.totalorder %s120, %s121
      %p130 = scmp.eq.s32.totalorder %s37, 0
      %p131 = por %p129, %p130
      %p132 = scmp.ne.s32.totalorder %s120, %s121
      %p133 = scmp.eq.s32.totalorder %s38, 1
      %p134 = por %p132, %p133
      %p136 = scmp.ne.s32.totalorder %s121, %s135
      %p137 = scmp.eq.s32.totalorder %s38, 0
      %p138 = por %p136, %p137
      %s140 = sadd.s32 %s139, 1
      %p143 = scmp.eq.s32.totalorder %s32, 1
      %p144 = scmp.ne.s32.totalorder %s139, %s141
      %p145 = scmp.eq.s32.totalorder %s32, 0
      %p146 = por %p144, %p145
      %p147 = scmp.ne.s32.totalorder %s139, %s141
      %p148 = scmp.eq.s32.totalorder %s37, 1
      %p149 = por %p147, %p148
      %p150 = scmp.ne.s32.totalorder %s141, %s142
      %p151 = scmp.eq.s32.totalorder %s37, 0
      %p152 = por %p150, %p151
      %p153 = scmp.ne.s32.totalorder %s141, %s142
      %p154 = scmp.eq.s32.totalorder %s38, 1
      %p155 = por %p153, %p154
      %p157 = scmp.ne.s32.totalorder %s142, %s156
      %p158 = scmp.eq.s32.totalorder %s38, 0
      %p159 = por %p157, %p158
      %s161 = sadd.s32 %s160, 1
      %p164 = scmp.eq.s32.totalorder %s32, 1
      %p165 = scmp.ne.s32.totalorder %s160, %s162
      %p166 = scmp.eq.s32.totalorder %s32, 0
      %p167 = por %p165, %p166
      %p168 = scmp.ne.s32.totalorder %s160, %s162
      %p169 = scmp.eq.s32.totalorder %s37, 1
      %p170 = por %p168, %p169
      %p171 = scmp.ne.s32.totalorder %s162, %s163
      %p172 = scmp.eq.s32.totalorder %s37, 0
      %p173 = por %p171, %p172
      %p174 = scmp.ne.s32.totalorder %s162, %s163
      %p175 = scmp.eq.s32.totalorder %s38, 1
      %p176 = por %p174, %p175
      %p178 = scmp.ne.s32.totalorder %s163, %s177
      %p179 = scmp.eq.s32.totalorder %s38, 0
      %p180 = por %p178, %p179
      %s182 = sadd.s32 %s181, 1
      %p185 = scmp.eq.s32.totalorder %s32, 1
      %p186 = scmp.ne.s32.totalorder %s181, %s183
      %p187 = scmp.eq.s32.totalorder %s32, 0
      %p188 = por %p186, %p187
      %p189 = scmp.ne.s32.totalorder %s181, %s183
      %p190 = scmp.eq.s32.totalorder %s37, 1
      %p191 = por %p189, %p190
      %p192 = scmp.ne.s32.totalorder %s183, %s184
      %p193 = scmp.eq.s32.totalorder %s37, 0
      %p194 = por %p192, %p193
      %p195 = scmp.ne.s32.totalorder %s183, %s184
      %p196 = scmp.eq.s32.totalorder %s38, 1
      %p197 = por %p195, %p196
      %p199 = scmp.ne.s32.totalorder %s184, %s198
      %p200 = scmp.eq.s32.totalorder %s38, 0
      %p201 = por %p199, %p200
      %s203 = sadd.s32 %s202, 1
      %p206 = scmp.eq.s32.totalorder %s32, 1
      %p207 = scmp.ne.s32.totalorder %s202, %s204
      %p208 = scmp.eq.s32.totalorder %s32, 0
      %p209 = por %p207, %p208
      %p210 = scmp.ne.s32.totalorder %s202, %s204
      %p211 = scmp.eq.s32.totalorder %s37, 1
      %p212 = por %p210, %p211
      %p213 = scmp.ne.s32.totalorder %s204, %s205
      %p214 = scmp.eq.s32.totalorder %s37, 0
      %p215 = por %p213, %p214
      %p216 = scmp.ne.s32.totalorder %s204, %s205
      %p217 = scmp.eq.s32.totalorder %s38, 1
      %p218 = por %p216, %p217
      %p220 = scmp.ne.s32.totalorder %s205, %s219
      %p221 = scmp.eq.s32.totalorder %s38, 0
      %p222 = por %p220, %p221
      %s224 = sadd.s32 %s223, 1
      %p227 = scmp.eq.s32.totalorder %s32, 1
      %p228 = scmp.ne.s32.totalorder %s223, %s225
      %p229 = scmp.eq.s32.totalorder %s32, 0
      %p230 = por %p228, %p229
      %p231 = scmp.ne.s32.totalorder %s223, %s225
      %p232 = scmp.eq.s32.totalorder %s37, 1
      %p233 = por %p231, %p232
      %p234 = scmp.ne.s32.totalorder %s225, %s226
      %p235 = scmp.eq.s32.totalorder %s37, 0
      %p236 = por %p234, %p235
      %p237 = scmp.ne.s32.totalorder %s225, %s226
      %p238 = scmp.eq.s32.totalorder %s38, 1
      %p239 = por %p237, %p238
      %p241 = scmp.ne.s32.totalorder %s226, %s240
      %p242 = scmp.eq.s32.totalorder %s38, 0
      %p243 = por %p241, %p242
      %s245 = sadd.s32 %s244, 1
      %p248 = scmp.eq.s32.totalorder %s32, 1
      %p249 = scmp.ne.s32.totalorder %s244, %s246
      %p250 = scmp.eq.s32.totalorder %s32, 0
      %p251 = por %p249, %p250
      %p252 = scmp.ne.s32.totalorder %s244, %s246
      %p253 = scmp.eq.s32.totalorder %s37, 1
      %p254 = por %p252, %p253
      %p255 = scmp.ne.s32.totalorder %s246, %s247
      %p256 = scmp.eq.s32.totalorder %s37, 0
      %p257 = por %p255, %p256
      %p258 = scmp.ne.s32.totalorder %s246, %s247
      %p259 = scmp.eq.s32.totalorder %s38, 1
      %p260 = por %p258, %p259
      %p262 = scmp.ne.s32.totalorder %s247, %s261
      %p263 = scmp.eq.s32.totalorder %s38, 0
      %p264 = por %p262, %p263
      %s266 = sadd.s32 %s265, 1
      %p269 = scmp.eq.s32.totalorder %s32, 1
      %p270 = scmp.ne.s32.totalorder %s265, %s267
      %p271 = scmp.eq.s32.totalorder %s32, 0
      %p272 = por %p270, %p271
      %p273 = scmp.ne.s32.totalorder %s265, %s267
      %p274 = scmp.eq.s32.totalorder %s37, 1
      %p275 = por %p273, %p274
      %p276 = scmp.ne.s32.totalorder %s267, %s268
      %p277 = scmp.eq.s32.totalorder %s37, 0
      %p278 = por %p276, %p277
      %p279 = scmp.ne.s32.totalorder %s267, %s268
      %p280 = scmp.eq.s32.totalorder %s38, 1
      %p281 = por %p279, %p280
      %p283 = scmp.ne.s32.totalorder %s268, %s282
      %p284 = scmp.eq.s32.totalorder %s38, 0
      %p285 = por %p283, %p284
      %s287 = sadd.s32 %s286, 1
      %p290 = scmp.eq.s32.totalorder %s32, 1
      %p291 = scmp.ne.s32.totalorder %s286, %s288
      %p292 = scmp.eq.s32.totalorder %s32, 0
      %p293 = por %p291, %p292
      %p294 = scmp.ne.s32.totalorder %s286, %s288
      %p295 = scmp.eq.s32.totalorder %s37, 1
      %p296 = por %p294, %p295
      %p297 = scmp.ne.s32.totalorder %s288, %s289
      %p298 = scmp.eq.s32.totalorder %s37, 0
      %p299 = por %p297, %p298
      %p300 = scmp.ne.s32.totalorder %s288, %s289
      %p301 = scmp.eq.s32.totalorder %s38, 1
      %p302 = por %p300, %p301
      %p304 = scmp.ne.s32.totalorder %s289, %s303
      %p305 = scmp.eq.s32.totalorder %s38, 0
      %p306 = por %p304, %p305
      %s308 = sadd.s32 %s307, 1
      %p311 = scmp.eq.s32.totalorder %s32, 1
      %p312 = scmp.ne.s32.totalorder %s307, %s309
      %p313 = scmp.eq.s32.totalorder %s32, 0
      %p314 = por %p312, %p313
      %p315 = scmp.ne.s32.totalorder %s307, %s309
      %p316 = scmp.eq.s32.totalorder %s37, 1
      %p317 = por %p315, %p316
      %p318 = scmp.ne.s32.totalorder %s309, %s310
      %p319 = scmp.eq.s32.totalorder %s37, 0
      %p320 = por %p318, %p319
      %p321 = scmp.ne.s32.totalorder %s309, %s310
      %p322 = scmp.eq.s32.totalorder %s38, 1
      %p323 = por %p321, %p322
      %p325 = scmp.ne.s32.totalorder %s310, %s324
      %p326 = scmp.eq.s32.totalorder %s38, 0
      %p327 = por %p325, %p326
      %s329 = sadd.s32 %s328, 1
      %p332 = scmp.eq.s32.totalorder %s32, 1
      %p333 = scmp.ne.s32.totalorder %s328, %s330
      %p334 = scmp.eq.s32.totalorder %s32, 0
      %p335 = por %p333, %p334
      %p336 = scmp.ne.s32.totalorder %s328, %s330
      %p337 = scmp.eq.s32.totalorder %s37, 1
      %p338 = por %p336, %p337
      %p339 = scmp.ne.s32.totalorder %s330, %s331
      %p340 = scmp.eq.s32.totalorder %s37, 0
      %p341 = por %p339, %p340
      %p342 = scmp.ne.s32.totalorder %s330, %s331
      %p343 = scmp.eq.s32.totalorder %s38, 1
      %p344 = por %p342, %p343
      %p346 = scmp.ne.s32.totalorder %s331, %s345
      %p347 = scmp.eq.s32.totalorder %s38, 0
      %p348 = por %p346, %p347
      %s350 = sadd.s32 %s349, 1
      %p353 = scmp.eq.s32.totalorder %s32, 1
      %p354 = scmp.ne.s32.totalorder %s349, %s351
      %p355 = scmp.eq.s32.totalorder %s32, 0
      %p356 = por %p354, %p355
      %p357 = scmp.ne.s32.totalorder %s349, %s351
      %p358 = scmp.eq.s32.totalorder %s37, 1
      %p359 = por %p357, %p358
      %p360 = scmp.ne.s32.totalorder %s351, %s352
      %p361 = scmp.eq.s32.totalorder %s37, 0
      %p362 = por %p360, %p361
      %p363 = scmp.ne.s32.totalorder %s351, %s352
      %p364 = scmp.eq.s32.totalorder %s38, 1
      %p365 = por %p363, %p364
      %p367 = scmp.ne.s32.totalorder %s352, %s366
      %p368 = scmp.eq.s32.totalorder %s38, 0
      %p369 = por %p367, %p368
      %s371 = sadd.s32 %s370, 1
      %p374 = scmp.eq.s32.totalorder %s32, 1
      %p375 = scmp.ne.s32.totalorder %s370, %s372
      %p376 = scmp.eq.s32.totalorder %s32, 0
      %p377 = por %p375, %p376
      %p378 = scmp.ne.s32.totalorder %s370, %s372
      %p379 = scmp.eq.s32.totalorder %s37, 1
      %p380 = por %p378, %p379
      %p381 = scmp.ne.s32.totalorder %s372, %s373
      %p382 = scmp.eq.s32.totalorder %s37, 0
      %p383 = por %p381, %p382
      %p384 = scmp.ne.s32.totalorder %s372, %s373
      %p385 = scmp.eq.s32.totalorder %s38, 1
      %p386 = por %p384, %p385
      %p388 = scmp.ne.s32.totalorder %s373, %s387
      %p389 = scmp.eq.s32.totalorder %s38, 0
      %p390 = por %p388, %p389
      %s392 = sadd.s32 %s391, 1
      %p395 = scmp.eq.s32.totalorder %s32, 1
      %p396 = scmp.ne.s32.totalorder %s391, %s393
      %p397 = scmp.eq.s32.totalorder %s32, 0
      %p398 = por %p396, %p397
      %p399 = scmp.ne.s32.totalorder %s391, %s393
      %p400 = scmp.eq.s32.totalorder %s37, 1
      %p401 = por %p399, %p400
      %p402 = scmp.ne.s32.totalorder %s393, %s394
      %p403 = scmp.eq.s32.totalorder %s37, 0
      %p404 = por %p402, %p403
      %p405 = scmp.ne.s32.totalorder %s393, %s394
      %p406 = scmp.eq.s32.totalorder %s38, 1
      %p407 = por %p405, %p406
      %p409 = scmp.ne.s32.totalorder %s394, %s408
      %p410 = scmp.eq.s32.totalorder %s38, 0
      %p411 = por %p409, %p410
      %s413 = sadd.s32 %s412, 1
      %p416 = scmp.eq.s32.totalorder %s32, 1
      %p417 = scmp.ne.s32.totalorder %s412, %s414
      %p418 = scmp.eq.s32.totalorder %s32, 0
      %p419 = por %p417, %p418
      %p420 = scmp.ne.s32.totalorder %s412, %s414
      %p421 = scmp.eq.s32.totalorder %s37, 1
      %p422 = por %p420, %p421
      %p423 = scmp.ne.s32.totalorder %s414, %s415
      %p424 = scmp.eq.s32.totalorder %s37, 0
      %p425 = por %p423, %p424
      %p426 = scmp.ne.s32.totalorder %s414, %s415
      %p427 = scmp.eq.s32.totalorder %s38, 1
      %p428 = por %p426, %p427
      %p430 = scmp.ne.s32.totalorder %s415, %s429
      %p431 = scmp.eq.s32.totalorder %s38, 0
      %p432 = por %p430, %p431
      %s434 = sadd.s32 %s433, 1
      %p437 = scmp.eq.s32.totalorder %s32, 1
      %p438 = scmp.ne.s32.totalorder %s433, %s435
      %p439 = scmp.eq.s32.totalorder %s32, 0
      %p440 = por %p438, %p439
      %p441 = scmp.ne.s32.totalorder %s433, %s435
      %p442 = scmp.eq.s32.totalorder %s37, 1
      %p443 = por %p441, %p442
      %p444 = scmp.ne.s32.totalorder %s435, %s436
      %p445 = scmp.eq.s32.totalorder %s37, 0
      %p446 = por %p444, %p445
      %p447 = scmp.ne.s32.totalorder %s435, %s436
      %p448 = scmp.eq.s32.totalorder %s38, 1
      %p449 = por %p447, %p448
      %p451 = scmp.ne.s32.totalorder %s436, %s450
      %p452 = scmp.eq.s32.totalorder %s38, 0
      %p453 = por %p451, %p452
      %s455 = sadd.s32 %s454, 1
      %p458 = scmp.eq.s32.totalorder %s32, 1
      %p459 = scmp.ne.s32.totalorder %s454, %s456
      %p460 = scmp.eq.s32.totalorder %s32, 0
      %p461 = por %p459, %p460
      %p462 = scmp.ne.s32.totalorder %s454, %s456
      %p463 = scmp.eq.s32.totalorder %s37, 1
      %p464 = por %p462, %p463
      %p465 = scmp.ne.s32.totalorder %s456, %s457
      %p466 = scmp.eq.s32.totalorder %s37, 0
      %p467 = por %p465, %p466
      %p468 = scmp.ne.s32.totalorder %s456, %s457
      %p469 = scmp.eq.s32.totalorder %s38, 1
      %p470 = por %p468, %p469
      %p472 = scmp.ne.s32.totalorder %s457, %s471
      %p473 = scmp.eq.s32.totalorder %s38, 0
      %p474 = por %p472, %p473
      %s475 = ssub.s32 %s32, %s39
      %p476 = scmp.eq.s32.totalorder %s475, 0
      %s478 = sadd.s32 %s477, 1
      %s479 = scalar_select %p476, %s477, %s478
      %p482 = pneg %p476
      %p483 = scmp.eq.s32.totalorder %s32, 1
      %p484 = por %p482, %p483
      %p485 = scmp.ne.s32.totalorder %s477, %s480
      %p486 = scmp.eq.s32.totalorder %s32, 0
      %p487 = por %p485, %p486
      %p488 = scmp.ne.s32.totalorder %s477, %s480
      %p489 = scmp.eq.s32.totalorder %s37, 1
      %p490 = por %p488, %p489
      %p491 = scmp.ne.s32.totalorder %s480, %s481
      %p492 = scmp.eq.s32.totalorder %s37, 0
      %p493 = por %p491, %p492
      %p494 = scmp.ne.s32.totalorder %s480, %s481
      %p495 = scmp.eq.s32.totalorder %s38, 1
      %p496 = por %p494, %p495
      %p498 = scmp.ne.s32.totalorder %s481, %s497
      %p499 = scmp.eq.s32.totalorder %s38, 0
      %p500 = por %p498, %p499
      %s501 = ssub.s32 %s32, %s39
      %p502 = scmp.eq.s32.totalorder %s501, 0
      %s504 = sadd.s32 %s503, 1
      %s505 = scalar_select %p502, %s503, %s504
      %p508 = pneg %p502
      %p509 = scmp.eq.s32.totalorder %s32, 1
      %p510 = por %p508, %p509
      %p511 = scmp.ne.s32.totalorder %s503, %s506
      %p512 = scmp.eq.s32.totalorder %s32, 0
      %p513 = por %p511, %p512
      %p514 = scmp.ne.s32.totalorder %s503, %s506
      %p515 = scmp.eq.s32.totalorder %s37, 1
      %p516 = por %p514, %p515
      %p517 = scmp.ne.s32.totalorder %s506, %s507
      %p518 = scmp.eq.s32.totalorder %s37, 0
      %p519 = por %p517, %p518
      %p520 = scmp.ne.s32.totalorder %s506, %s507
      %p521 = scmp.eq.s32.totalorder %s38, 1
      %p522 = por %p520, %p521
      %p524 = scmp.ne.s32.totalorder %s507, %s523
      %p525 = scmp.eq.s32.totalorder %s38, 0
      %p526 = por %p524, %p525
      %p527 = scmp.le.s32.totalorder 1, %s32
      %p528 = scmp.lt.s32.totalorder %s32, 3
      %p529 = pnand %p527, %p528
      %p530 = pneg %p529
      // Predicated region
      $region9: #{dual_attention_forward.1} parent=5 // pred_check
        _
      $region10: #{dual_attention_forward.1} parent=5 // pred_check_branch
        %532 = sbr.rel (%p529) target = $region12
      $region11: #{dual_attention_forward.1} parent=5 // pred_region
        %s533 = ssub.s32 %s32, 1
        // Predicated region
        $region13: #{dual_attention_forward.1} parent=11 // pred_check
          %p534 = pneg %p131
        $region14: #{dual_attention_forward.1} parent=11 // pred_check_branch
          %536 = sbr.rel (%p534) target = $region16
        $region15: #{dual_attention_forward.1} parent=11 // pred_region
          %538 = vsyncadd [#allocation3], 0
          %s539 = sshll.u32 %s3, 4
          %s540 = int_to_ptr.hbm [resolvable:$true] %s539
          %s541 = sshll.u32 [#allocation2], 4
          %s542 = int_to_ptr.vmem [resolvable:$true] %s541
          %547 = dma.hbm_to_vmem [thread:$0]  %s540, 256, %s542, [#allocation3], 128, 128, 8
        $region16: #{dual_attention_forward.1} parent=11 // pred_fallthru
          _
        // Predicated region
        $region17: #{dual_attention_forward.1} parent=11 // pred_check
          %p548 = pneg %p152
        $region18: #{dual_attention_forward.1} parent=11 // pred_check_branch
          %550 = sbr.rel (%p548) target = $region20
        $region19: #{dual_attention_forward.1} parent=11 // pred_region
          _
        $region20: #{dual_attention_forward.1} parent=11 // pred_fallthru
          _
        // Predicated region
        $region21: #{dual_attention_forward.1} parent=11 // pred_check
          %p551 = pneg %p173
        $region22: #{dual_attention_forward.1} parent=11 // pred_check_branch
          %553 = sbr.rel (%p551) target = $region24
        $region23: #{dual_attention_forward.1} parent=11 // pred_region
          _
        $region24: #{dual_attention_forward.1} parent=11 // pred_fallthru
          _
        // Predicated region
        $region25: #{dual_attention_forward.1} parent=11 // pred_check
          %p554 = pneg %p194
        $region26: #{dual_attention_forward.1} parent=11 // pred_check_branch
          %556 = sbr.rel (%p554) target = $region28
        $region27: #{dual_attention_forward.1} parent=11 // pred_region
          _
        $region28: #{dual_attention_forward.1} parent=11 // pred_fallthru
          _
        // Predicated region
        $region29: #{dual_attention_forward.1} parent=11 // pred_check
          %p557 = pneg %p215
        $region30: #{dual_attention_forward.1} parent=11 // pred_check_branch
          %559 = sbr.rel (%p557) target = $region32
        $region31: #{dual_attention_forward.1} parent=11 // pred_region
          _
        $region32: #{dual_attention_forward.1} parent=11 // pred_fallthru
          _
        // Predicated region
        $region33: #{dual_attention_forward.1} parent=11 // pred_check
          %p560 = pneg %p236
        $region34: #{dual_attention_forward.1} parent=11 // pred_check_branch
          %562 = sbr.rel (%p560) target = $region36
        $region35: #{dual_attention_forward.1} parent=11 // pred_region
          %564 = vsyncadd [#allocation5], 0
          %s565 = sshll.u32 %s8, 4
          %s566 = int_to_ptr.hbm [resolvable:$true] %s565
          %s567 = sshll.u32 [#allocation4], 4
          %s568 = int_to_ptr.vmem [resolvable:$true] %s567
          %573 = dma.hbm_to_vmem [thread:$0]  %s566, 128, %s568, [#allocation5], 64, 64, 4
        $region36: #{dual_attention_forward.1} parent=11 // pred_fallthru
          _
        // Predicated region
        $region37: #{dual_attention_forward.1} parent=11 // pred_check
          %p574 = pneg %p257
        $region38: #{dual_attention_forward.1} parent=11 // pred_check_branch
          %576 = sbr.rel (%p574) target = $region40
        $region39: #{dual_attention_forward.1} parent=11 // pred_region
          _
        $region40: #{dual_attention_forward.1} parent=11 // pred_fallthru
          _
        // Predicated region
        $region41: #{dual_attention_forward.1} parent=11 // pred_check
          %p577 = pneg %p278
        $region42: #{dual_attention_forward.1} parent=11 // pred_check_branch
          %579 = sbr.rel (%p577) target = $region44
        $region43: #{dual_attention_forward.1} parent=11 // pred_region
          %581 = vsyncadd [#allocation5], 0
          %s582 = sshll.u32 %s10, 4
          %s583 = int_to_ptr.hbm [resolvable:$true] %s582
          %s584 = sshll.u32 [#allocation6], 4
          %s585 = int_to_ptr.vmem [resolvable:$true] %s584
          %590 = dma.hbm_to_vmem [thread:$0]  %s583, 256, %s585, [#allocation5], 128, 128, 8
        $region44: #{dual_attention_forward.1} parent=11 // pred_fallthru
          _
        // Predicated region
        $region45: #{dual_attention_forward.1} parent=11 // pred_check
          %p591 = pneg %p299
        $region46: #{dual_attention_forward.1} parent=11 // pred_check_branch
          %593 = sbr.rel (%p591) target = $region48
        $region47: #{dual_attention_forward.1} parent=11 // pred_region
          _
        $region48: #{dual_attention_forward.1} parent=11 // pred_fallthru
          _
        // Predicated region
        $region49: #{dual_attention_forward.1} parent=11 // pred_check
          %p594 = pneg %p320
        $region50: #{dual_attention_forward.1} parent=11 // pred_check_branch
          %596 = sbr.rel (%p594) target = $region52
        $region51: #{dual_attention_forward.1} parent=11 // pred_region
          _
        $region52: #{dual_attention_forward.1} parent=11 // pred_fallthru
          _
        // Predicated region
        $region53: #{dual_attention_forward.1} parent=11 // pred_check
          %p597 = pneg %p341
        $region54: #{dual_attention_forward.1} parent=11 // pred_check_branch
          %599 = sbr.rel (%p597) target = $region56
        $region55: #{dual_attention_forward.1} parent=11 // pred_region
          _
        $region56: #{dual_attention_forward.1} parent=11 // pred_fallthru
          _
        // Predicated region
        $region57: #{dual_attention_forward.1} parent=11 // pred_check
          %p600 = pneg %p362
        $region58: #{dual_attention_forward.1} parent=11 // pred_check_branch
          %602 = sbr.rel (%p600) target = $region60
        $region59: #{dual_attention_forward.1} parent=11 // pred_region
          %604 = vsyncadd [#allocation8], 0
          %s605 = sshll.u32 %s14, 4
          %s606 = int_to_ptr.hbm [resolvable:$true] %s605
          %s607 = sshll.u32 [#allocation7], 4
          %s608 = int_to_ptr.vmem [resolvable:$true] %s607
          %613 = dma.hbm_to_vmem [thread:$0]  %s606, 2048, %s608, [#allocation8], 256, 256, 16
        $region60: #{dual_attention_forward.1} parent=11 // pred_fallthru
          _
        // Predicated region
        $region61: #{dual_attention_forward.1} parent=11 // pred_check
          %p614 = pneg %p383
        $region62: #{dual_attention_forward.1} parent=11 // pred_check_branch
          %616 = sbr.rel (%p614) target = $region64
        $region63: #{dual_attention_forward.1} parent=11 // pred_region
          _
        $region64: #{dual_attention_forward.1} parent=11 // pred_fallthru
          _
        // Predicated region
        $region65: #{dual_attention_forward.1} parent=11 // pred_check
          %p617 = pneg %p404
        $region66: #{dual_attention_forward.1} parent=11 // pred_check_branch
          %619 = sbr.rel (%p617) target = $region68
        $region67: #{dual_attention_forward.1} parent=11 // pred_region
          %621 = vsyncadd [#allocation8], 0
          %s622 = sshll.u32 %s16, 4
          %s623 = int_to_ptr.hbm [resolvable:$true] %s622
          %s624 = sshll.u32 [#allocation9], 4
          %s625 = int_to_ptr.vmem [resolvable:$true] %s624
          %630 = dma.hbm_to_vmem [thread:$0]  %s623, 640, %s625, [#allocation8], 128, 128, 8
        $region68: #{dual_attention_forward.1} parent=11 // pred_fallthru
          _
        // Predicated region
        $region69: #{dual_attention_forward.1} parent=11 // pred_check
          %p631 = pneg %p425
        $region70: #{dual_attention_forward.1} parent=11 // pred_check_branch
          %633 = sbr.rel (%p631) target = $region72
        $region71: #{dual_attention_forward.1} parent=11 // pred_region
          _
        $region72: #{dual_attention_forward.1} parent=11 // pred_fallthru
          _
        // Predicated region
        $region73: #{dual_attention_forward.1} parent=11 // pred_check
          %p634 = pneg %p446
        $region74: #{dual_attention_forward.1} parent=11 // pred_check_branch
          %636 = sbr.rel (%p634) target = $region76
        $region75: #{dual_attention_forward.1} parent=11 // pred_region
          _
        $region76: #{dual_attention_forward.1} parent=11 // pred_fallthru
          _
        // Predicated region
        $region77: #{dual_attention_forward.1} parent=11 // pred_check
          %p637 = pneg %p467
        $region78: #{dual_attention_forward.1} parent=11 // pred_check_branch
          %639 = sbr.rel (%p637) target = $region80
        $region79: #{dual_attention_forward.1} parent=11 // pred_region
          %641 = vsyncadd [#allocation11], 0
          %s642 = sshll.u32 %s19, 4
          %s643 = int_to_ptr.hbm [resolvable:$true] %s642
          %s644 = sshll.u32 [#allocation10], 4
          %s645 = int_to_ptr.vmem [resolvable:$true] %s644
          %650 = dma.hbm_to_vmem [thread:$0]  %s643, 512, %s645, [#allocation11], 256, 256, 16
        $region80: #{dual_attention_forward.1} parent=11 // pred_fallthru
          _
      $region12: #{dual_attention_forward.1} parent=5 // pred_fallthru
        _
      %p651 = scmp.lt.s32.totalorder %s32, 2
      // Predicated region
      $region81: #{dual_attention_forward.1} parent=5 // pred_check
        %p652 = pneg %p651
      $region82: #{dual_attention_forward.1} parent=5 // pred_check_branch
        %654 = sbr.rel (%p652) target = $region84
      $region83: #{dual_attention_forward.1} parent=5 // pred_region
        // Predicated region
        $region85: #{dual_attention_forward.1} parent=83 // pred_check
          %p655 = pneg %p52
        $region86: #{dual_attention_forward.1} parent=83 // pred_check_branch
          %657 = sbr.rel (%p655) target = $region88
        $region87: #{dual_attention_forward.1} parent=83 // pred_region
          %p658 = scmp.lt.s32.totalorder %s32, 1
          %s659 = scalar_select %p658, %s32, 1
          %s660 = smul.addr %s659, 4
          %s661 = smul.addr %s660, 8
          %s662 = scalar_lea.vmem %s0, %s661
        $region88: #{dual_attention_forward.1} parent=83 // pred_fallthru
          _
        // Predicated region
        $region89: #{dual_attention_forward.1} parent=83 // pred_check
          %p663 = pneg %p78
        $region90: #{dual_attention_forward.1} parent=83 // pred_check_branch
          %665 = sbr.rel (%p663) target = $region92
        $region91: #{dual_attention_forward.1} parent=83 // pred_region
          %p666 = scmp.lt.s32.totalorder %s32, 1
          %s667 = scalar_select %p666, %s32, 1
          %s668 = smul.addr %s667, 4
          %s669 = smul.addr %s668, 8
          %s670 = scalar_lea.vmem %s1, %s669
        $region92: #{dual_attention_forward.1} parent=83 // pred_fallthru
          _
        // Predicated region
        $region93: #{dual_attention_forward.1} parent=83 // pred_check
          %p671 = pneg %p104
        $region94: #{dual_attention_forward.1} parent=83 // pred_check_branch
          %673 = sbr.rel (%p671) target = $region96
        $region95: #{dual_attention_forward.1} parent=83 // pred_region
          %p674 = scmp.lt.s32.totalorder %s32, 1
          %s675 = scalar_select %p674, %s32, 1
          %s676 = smul.addr %s675, 8
          %s677 = scalar_lea.vmem %s2, %s676
        $region96: #{dual_attention_forward.1} parent=83 // pred_fallthru
          _
      $region84: #{dual_attention_forward.1} parent=5 // pred_fallthru
        _
      %p678 = scmp.le.s32.totalorder 1, %s32
      %p679 = scmp.lt.s32.totalorder %s32, 3
      %p680 = pnand %p678, %p679
      %p681 = pneg %p680
      // Predicated region
      $region97: #{dual_attention_forward.1} parent=5 // pred_check
        _
      $region98: #{dual_attention_forward.1} parent=5 // pred_check_branch
        %683 = sbr.rel (%p680) target = $region100
      $region99: #{dual_attention_forward.1} parent=5 // pred_region
        %s684 = ssub.s32 %s32, 1
        // Predicated region
        $region101: #{dual_attention_forward.1} parent=99 // pred_check
          %p685 = pneg %p131
        $region102: #{dual_attention_forward.1} parent=99 // pred_check_branch
          %687 = sbr.rel (%p685) target = $region104
        $region103: #{dual_attention_forward.1} parent=99 // pred_region
          %689 = dma.done [#allocation3], 256
        $region104: #{dual_attention_forward.1} parent=99 // pred_fallthru
          _
        // Predicated region
        $region105: #{dual_attention_forward.1} parent=99 // pred_check
          %p690 = pneg %p236
        $region106: #{dual_attention_forward.1} parent=99 // pred_check_branch
          %692 = sbr.rel (%p690) target = $region108
        $region107: #{dual_attention_forward.1} parent=99 // pred_region
          %694 = dma.done [#allocation5], 128
        $region108: #{dual_attention_forward.1} parent=99 // pred_fallthru
          _
        // Predicated region
        $region109: #{dual_attention_forward.1} parent=99 // pred_check
          %p695 = pneg %p278
        $region110: #{dual_attention_forward.1} parent=99 // pred_check_branch
          %697 = sbr.rel (%p695) target = $region112
        $region111: #{dual_attention_forward.1} parent=99 // pred_region
          %699 = dma.done [#allocation5], 256
        $region112: #{dual_attention_forward.1} parent=99 // pred_fallthru
          _
        // Predicated region
        $region113: #{dual_attention_forward.1} parent=99 // pred_check
          %p700 = pneg %p362
        $region114: #{dual_attention_forward.1} parent=99 // pred_check_branch
          %702 = sbr.rel (%p700) target = $region116
        $region115: #{dual_attention_forward.1} parent=99 // pred_region
          %704 = dma.done [#allocation8], 2048
        $region116: #{dual_attention_forward.1} parent=99 // pred_fallthru
          _
        // Predicated region
        $region117: #{dual_attention_forward.1} parent=99 // pred_check
          %p705 = pneg %p404
        $region118: #{dual_attention_forward.1} parent=99 // pred_check_branch
          %707 = sbr.rel (%p705) target = $region120
        $region119: #{dual_attention_forward.1} parent=99 // pred_region
          %709 = dma.done [#allocation8], 640
        $region120: #{dual_attention_forward.1} parent=99 // pred_fallthru
          _
        // Predicated region
        $region121: #{dual_attention_forward.1} parent=99 // pred_check
          %p710 = pneg %p467
        $region122: #{dual_attention_forward.1} parent=99 // pred_check_branch
          %712 = sbr.rel (%p710) target = $region124
        $region123: #{dual_attention_forward.1} parent=99 // pred_region
          %714 = dma.done [#allocation11], 512
        $region124: #{dual_attention_forward.1} parent=99 // pred_fallthru
          _
        %p715 = scmp.lt.s32.totalorder %s37, 1
        %s716 = scalar_select %p715, %s37, 1
        %s717 = smul.addr %s716, 4
        %s718 = smul.addr %s717, 8
        %s719 = scalar_lea.vmem %s0, %s718
        %p720 = pneg %p58
        %p721 = pneg %p55
        %p722 = scmp.lt.s32.totalorder %s37, 1
        %s723 = scalar_select %p722, %s37, 1
        %s724 = smul.addr %s723, 4
        %s725 = smul.addr %s724, 8
        %s726 = scalar_lea.vmem %s1, %s725
        %p727 = pneg %p84
        %p728 = pneg %p81
        %p729 = scmp.lt.s32.totalorder %s37, 1
        %s730 = scalar_select %p729, %s37, 1
        %s731 = smul.addr %s730, 8
        %s732 = scalar_lea.vmem %s2, %s731
        %p733 = pneg %p110
        %p734 = pneg %p107
        %p735 = pneg %p131
        %p736 = pneg %p128
        %p737 = pneg %p152
        %p738 = pneg %p149
        %p739 = pneg %p173
        %p740 = pneg %p170
        %p741 = pneg %p194
        %p742 = pneg %p191
        %p743 = pneg %p215
        %p744 = pneg %p212
        %p745 = pneg %p236
        %p746 = pneg %p233
        %p747 = pneg %p257
        %p748 = pneg %p254
        %p749 = pneg %p278
        %p750 = pneg %p275
        %p751 = pneg %p299
        %p752 = pneg %p296
        %p753 = pneg %p320
        %p754 = pneg %p317
        %p755 = pneg %p341
        %p756 = pneg %p338
        %p757 = pneg %p362
        %p758 = pneg %p359
        %p759 = pneg %p383
        %p760 = pneg %p380
        %p761 = pneg %p404
        %p762 = pneg %p401
        %p763 = pneg %p425
        %p764 = pneg %p422
        %p765 = pneg %p446
        %p766 = pneg %p443
        %p767 = pneg %p467
        %p768 = pneg %p464
        %p769 = pneg %p493
        %p770 = pneg %p490
        %p771 = scmp.lt.s32.totalorder %s37, 1
        %s772 = scalar_select %p771, %s37, 1
        %s773 = smul.addr %s772, 4
        %s774 = smul.addr %s773, 8
        %s775 = scalar_lea.vmem %s20, %s774
        %p776 = pneg %p519
        %p777 = pneg %p516
        %p778 = scmp.lt.s32.totalorder %s37, 1
        %s779 = scalar_select %p778, %s37, 1
        %s780 = smul.addr %s779, 4
        %s781 = smul.addr %s780, 8
        %s782 = scalar_lea.vmem %s21, %s781
        %p783 = scmp.lt.s32.totalorder %s37, 1
        %s784 = scalar_select %p783, %s37, 1
        %s785 = smul.addr %s784, 4
        %s786 = smul.addr %s785, 8
        %s787 = scalar_lea.vmem %s0, %s786
        %p788 = scmp.lt.s32.totalorder %s37, 1
        %s789 = scalar_select %p788, %s37, 1
        %s790 = smul.addr %s789, 4
        %s791 = smul.addr %s790, 8
        %s792 = scalar_lea.vmem %s1, %s791
        %p793 = scmp.lt.s32.totalorder %s37, 1
        %s794 = scalar_select %p793, %s37, 1
        %s795 = smul.addr %s794, 8
        %s796 = scalar_lea.vmem %s2, %s795
        %p797 = scmp.lt.s32.totalorder %s37, 1
        %s798 = scalar_select %p797, %s37, 1
        %s799 = smul.addr %s798, 4
        %s800 = smul.addr %s799, 8
        %s801 = scalar_lea.vmem %s20, %s800
        %p802 = scmp.lt.s32.totalorder %s37, 1
        %s803 = scalar_select %p802, %s37, 1
        %s804 = smul.addr %s803, 4
        %s805 = smul.addr %s804, 8
        %s806 = scalar_lea.vmem %s21, %s805
        %v807 = vld [vmem:[%s787] sm:$0xff]
        %v808 = vld [vmem:[%s787 + $0x8] sm:$0xff]
        %v809 = vld [vmem:[%s787 + $0x10] sm:$0xff]
        %v810 = vld [vmem:[%s787 + $0x18] sm:$0xff]
        %v811 = vld [vmem:[#allocation2] sm:$0xff]
        %v812 = vld [vmem:[#allocation2 + $0x8] sm:$0xff]
        %v813 = vld [vmem:[%s792] sm:$0xff]
        %v814 = vld [vmem:[%s792 + $0x8] sm:$0xff]
        %v815 = vld [vmem:[%s792 + $0x10] sm:$0xff]
        %v816 = vld [vmem:[%s792 + $0x18] sm:$0xff]
        %vm817 = vcmask 261120
        %v819 = vsel %vm817, %v811, 0
        %v822 = vsel %vm817, %v812, 0
        %824 = vmatpush.msra.mxu0 0.0
        %825 = vmatpush.msra.mxu0 0.0
        %826 = vmatpush.msra.mxu0 0.0
        %827 = vmatpush.msra.mxu0 0.0
        %828 = vmatpush.msra.mxu0 0.0
        %829 = vmatpush.msra.mxu0 0.0
        %830 = vmatpush.msra.mxu0 0.0
        %831 = vmatpush.msra.mxu0 0.0
        %832 = vmatpush.msra.mxu0 0.0
        %833 = vmatpush.msra.mxu0 0.0
        %834 = vmatpush.msra.mxu0 0.0
        %835 = vmatpush.msra.mxu0 0.0
        %836 = vmatpush.msra.mxu0 %v816
        %837 = vmatpush.msra.mxu0 %v815
        %838 = vmatpush.msra.mxu0 %v814
        %839 = vmatpush.msra.mxu0 %v813
        %840 = vmatmul.f32.gmra.mxu0 %v819
        %v841 = vpop.f32.mrf.mxu0
        %v842 = vadd.f32 0.0, %v841
        %843 = vmatmul.f32.gmra.mxu0 %v822
        %v844 = vpop.f32.mrf.mxu0
        %v845 = vadd.f32 0.0, %v844
        %846 = vdwg.mxu0
        %847 = vxpose.xlu0.b32.start [1/16] %v842, 128
        %848 = vxpose.xlu0.b32.cont [2/16] %v845, 128
        %849 = vxpose.xlu0.b32.cont [3/16] 0.0, 128
        %850 = vxpose.xlu0.b32.cont [4/16] 0.0, 128
        %851 = vxpose.xlu0.b32.cont [5/16] 0.0, 128
        %852 = vxpose.xlu0.b32.cont [6/16] 0.0, 128
        %853 = vxpose.xlu0.b32.cont [7/16] 0.0, 128
        %854 = vxpose.xlu0.b32.cont [8/16] 0.0, 128
        %855 = vxpose.xlu0.b32.cont [9/16] 0.0, 128
        %856 = vxpose.xlu0.b32.cont [10/16] 0.0, 128
        %857 = vxpose.xlu0.b32.cont [11/16] 0.0, 128
        %858 = vxpose.xlu0.b32.cont [12/16] 0.0, 128
        %859 = vxpose.xlu0.b32.cont [13/16] 0.0, 128
        %860 = vxpose.xlu0.b32.cont [14/16] 0.0, 128
        %861 = vxpose.xlu0.b32.cont [15/16] 0.0, 128
        %862 = vxpose.xlu0.b32.end [16/16] 0.0, 128
        %v863 = vpop.trf.xlu0
        %v864 = vpop.trf.xlu0
        %v865 = vpop.trf.xlu0
        %v866 = vpop.trf.xlu0
        %v867 = vpop.trf.xlu0
        %v868 = vpop.trf.xlu0
        %v869 = vpop.trf.xlu0
        %v870 = vpop.trf.xlu0
        %v871 = vpop.trf.xlu0
        %v872 = vpop.trf.xlu0
        %v873 = vpop.trf.xlu0
        %v874 = vpop.trf.xlu0
        %v875 = vpop.trf.xlu0
        %v876 = vpop.trf.xlu0
        %v877 = vpop.trf.xlu0
        %v878 = vpop.trf.xlu0
        %vm879 = vcmask 130048
        %v881 = vsel %vm879, %v863, 0
        %883 = vmatpush.msra.mxu0 0.0
        %884 = vmatpush.msra.mxu0 0.0
        %885 = vmatpush.msra.mxu0 0.0
        %886 = vmatpush.msra.mxu0 0.0
        %887 = vmatpush.msra.mxu0 0.0
        %888 = vmatpush.msra.mxu0 0.0
        %889 = vmatpush.msra.mxu0 0.0
        %890 = vmatpush.msra.mxu0 0.0
        %891 = vmatpush.msra.mxu0 0.0
        %892 = vmatpush.msra.mxu0 0.0
        %893 = vmatpush.msra.mxu0 0.0
        %894 = vmatpush.msra.mxu0 0.0
        %895 = vmatpush.msra.mxu0 0.0
        %896 = vmatpush.msra.mxu0 0.0
        %897 = vmatpush.msra.mxu0 %v809
        %898 = vmatpush.msra.mxu0 %v807
        %899 = vmatmul.f32.gmra.mxu0 %v881
        %v900 = vpop.f32.mrf.mxu0
        %v901 = vadd.f32 0.0, %v900
        %902 = vdwg.mxu0
        %903 = vmatpush.msra.mxu0 0.0
        %904 = vmatpush.msra.mxu0 0.0
        %905 = vmatpush.msra.mxu0 0.0
        %906 = vmatpush.msra.mxu0 0.0
        %907 = vmatpush.msra.mxu0 0.0
        %908 = vmatpush.msra.mxu0 0.0
        %909 = vmatpush.msra.mxu0 0.0
        %910 = vmatpush.msra.mxu0 0.0
        %911 = vmatpush.msra.mxu0 0.0
        %912 = vmatpush.msra.mxu0 0.0
        %913 = vmatpush.msra.mxu0 0.0
        %914 = vmatpush.msra.mxu0 0.0
        %915 = vmatpush.msra.mxu0 0.0
        %916 = vmatpush.msra.mxu0 0.0
        %917 = vmatpush.msra.mxu0 %v810
        %918 = vmatpush.msra.mxu0 %v808
        %919 = vmatmul.f32.gmra.mxu0 %v881
        %v920 = vpop.f32.mrf.mxu0
        %v921 = vadd.f32 0.0, %v920
        %922 = vdwg.mxu0
        %v923 = vld [vmem:[%s796] sm:$0xff]
        %vm924 = vcmp.gt.f32.partialorder %v923, 0.5
        %v925 = vsel %vm924, 1, 0
        %926 = vset.pattern.permute.xlu0 0
        %927 = vperm.xlu0 %926, %v925
        %v928 = vpop.permute.xlu0 %927
        %vm929 = vcmp.eq.s32.totalorder %v928, 1
        %v930 = vsel %vm929, -1e+30, %v901
        %v931 = vsel %vm929, -1e+30, %v921
        %v932 = vrot.slane %v930, 4
        %v933 = vmax.f32 %v930, %v932
        %v934 = vrot.slane %v933, 2
        %v935 = vmax.f32 %v933, %v934
        %v936 = vrot.slane %v935, 1
        %v937 = vmax.f32 %v935, %v936
        %v938 = vrot.slane %v931, 4
        %v939 = vmax.f32 %v931, %v938
        %v940 = vrot.slane %v939, 2
        %v941 = vmax.f32 %v939, %v940
        %v942 = vrot.slane %v941, 1
        %v943 = vmax.f32 %v941, %v942
        %v944 = vsub.f32 %v930, %v937
        %v945 = vsub.f32 %v931, %v943
        %v946 = vmul.f32 %v944, 1.442695
        %v947 = vpow.pop %v946
        %v948 = vmul.f32 %v945, 1.442695
        %v949 = vpow.pop %v948
        %v950 = vrot.slane %v947, 4
        %v951 = vadd.f32 %v947, %v950
        %v952 = vrot.slane %v951, 2
        %v953 = vadd.f32 %v951, %v952
        %v954 = vrot.slane %v953, 1
        %v955 = vadd.f32 %v953, %v954
        %v956 = vrot.slane %v949, 4
        %v957 = vadd.f32 %v949, %v956
        %v958 = vrot.slane %v957, 2
        %v959 = vadd.f32 %v957, %v958
        %v960 = vrot.slane %v959, 1
        %v961 = vadd.f32 %v959, %v960
        %v962 = vrcp.pop %v955
        %v963 = vrcp.pop %v961
        %v964 = vmul.f32 %v947, %v962
        %v965 = vmul.f32 %v949, %v963
        %vm966 = vcmask 64512
        %v968 = vsel %vm966, %v842, 0
        %v971 = vsel %vm966, %v845, 0
        %973 = vmatpush.msra.mxu0 0.0
        %974 = vmatpush.msra.mxu0 0.0
        %975 = vmatpush.msra.mxu0 0.0
        %976 = vmatpush.msra.mxu0 0.0
        %977 = vmatpush.msra.mxu0 0.0
        %978 = vmatpush.msra.mxu0 0.0
        %979 = vmatpush.msra.mxu0 0.0
        %980 = vmatpush.msra.mxu0 0.0
        %981 = vmatpush.msra.mxu0 0.0
        %982 = vmatpush.msra.mxu0 0.0
        %983 = vmatpush.msra.mxu0 0.0
        %984 = vmatpush.msra.mxu0 0.0
        %985 = vmatpush.msra.mxu0 0.0
        %986 = vmatpush.msra.mxu0 0.0
        %987 = vmatpush.msra.mxu0 0.0
        %988 = vmatpush.msra.mxu0 %v964
        %989 = vmatmul.f32.gmra.mxu0 %v968
        %v990 = vpop.f32.mrf.mxu0
        %v991 = vadd.f32 0.0, %v990
        %992 = vmatmul.f32.gmra.mxu0 %v971
        %v993 = vpop.f32.mrf.mxu0
        %v994 = vadd.f32 0.0, %v993
        %995 = vdwg.mxu0
        %996 = vmatpush.msra.mxu0 0.0
        %997 = vmatpush.msra.mxu0 0.0
        %998 = vmatpush.msra.mxu0 0.0
        %999 = vmatpush.msra.mxu0 0.0
        %1000 = vmatpush.msra.mxu0 0.0
        %1001 = vmatpush.msra.mxu0 0.0
        %1002 = vmatpush.msra.mxu0 0.0
        %1003 = vmatpush.msra.mxu0 0.0
        %1004 = vmatpush.msra.mxu0 0.0
        %1005 = vmatpush.msra.mxu0 0.0
        %1006 = vmatpush.msra.mxu0 0.0
        %1007 = vmatpush.msra.mxu0 0.0
        %1008 = vmatpush.msra.mxu0 0.0
        %1009 = vmatpush.msra.mxu0 0.0
        %1010 = vmatpush.msra.mxu0 0.0
        %1011 = vmatpush.msra.mxu0 %v965
        %1012 = vmatmul.f32.gmra.mxu0 %v968
        %v1013 = vpop.f32.mrf.mxu0
        %v1014 = vadd.f32 0.0, %v1013
        %1015 = vmatmul.f32.gmra.mxu0 %v971
        %v1016 = vpop.f32.mrf.mxu0
        %v1017 = vadd.f32 0.0, %v1016
        %1018 = vdwg.mxu0
        %v1019 = vadd.f32 %v807, %v991
        %v1020 = vadd.f32 %v808, %v1014
        %v1021 = vadd.f32 %v809, %v994
        %v1022 = vadd.f32 %v810, %v1017
        %1023 = vst [vmem:[%s801] sm:$0xff] %v1019
        %1024 = vst [vmem:[%s801 + $0x8] sm:$0xff] %v1020
        %1025 = vst [vmem:[%s801 + $0x10] sm:$0xff] %v1021
        %1026 = vst [vmem:[%s801 + $0x18] sm:$0xff] %v1022
        %1031 = vrot.lane.b32.xlu0 %v807, 127
        %v1032 = vpop.permute.xlu0 %1031
        %1033 = vrot.lane.b32.xlu0 %v808, 127
        %v1034 = vpop.permute.xlu0 %1033
        %1035 = vrot.lane.b32.xlu0 %v809, 127
        %v1036 = vpop.permute.xlu0 %1035
        %1037 = vrot.lane.b32.xlu0 %v810, 127
        %v1038 = vpop.permute.xlu0 %1037
        %vm1039 = vcmask 1039360
        %v1040 = vsel %vm1039, %v1032, %v1034
        %v1041 = vsel %vm1039, %v1036, %v1038
        %v1046 = vmax.f32 %v807, %v1040
        %v1047 = vmax.f32 %v808, %v1034
        %v1048 = vmax.f32 %v809, %v1041
        %v1049 = vmax.f32 %v810, %v1038
        %1050 = vrot.lane.b32.xlu0 %v807, 126
        %v1051 = vpop.permute.xlu0 %1050
        %1052 = vrot.lane.b32.xlu0 %v808, 126
        %v1053 = vpop.permute.xlu0 %1052
        %1054 = vrot.lane.b32.xlu0 %v809, 126
        %v1055 = vpop.permute.xlu0 %1054
        %1056 = vrot.lane.b32.xlu0 %v810, 126
        %v1057 = vpop.permute.xlu0 %1056
        %vm1058 = vcmask 1031168
        %v1059 = vsel %vm1058, %v1051, %v1053
        %v1060 = vsel %vm1058, %v1055, %v1057
        %v1065 = vmax.f32 %v1046, %v1059
        %v1066 = vmax.f32 %v1047, %v1053
        %v1067 = vmax.f32 %v1048, %v1060
        %v1068 = vmax.f32 %v1049, %v1057
        %1069 = vrot.lane.b32.xlu0 %v807, 112
        %v1070 = vpop.permute.xlu0 %1069
        %1071 = vrot.lane.b32.xlu0 %v808, 112
        %v1072 = vpop.permute.xlu0 %1071
        %1073 = vrot.lane.b32.xlu0 %v809, 112
        %v1074 = vpop.permute.xlu0 %1073
        %1075 = vrot.lane.b32.xlu0 %v810, 112
        %v1076 = vpop.permute.xlu0 %1075
        %vm1077 = vcmask 916480
        %v1078 = vsel %vm1077, %v1070, %v1072
        %v1079 = vsel %vm1077, %v1074, %v1076
        %v1084 = vmax.f32 %v1065, %v1078
        %v1085 = vmax.f32 %v1066, %v1072
        %v1086 = vmax.f32 %v1067, %v1079
        %v1087 = vmax.f32 %v1068, %v1076
        %1088 = vrot.lane.b32.xlu0 %v807, 111
        %v1089 = vpop.permute.xlu0 %1088
        %1090 = vrot.lane.b32.xlu0 %v808, 111
        %v1091 = vpop.permute.xlu0 %1090
        %1092 = vrot.lane.b32.xlu0 %v809, 111
        %v1093 = vpop.permute.xlu0 %1092
        %1094 = vrot.lane.b32.xlu0 %v810, 111
        %v1095 = vpop.permute.xlu0 %1094
        %vm1096 = vcmask 908288
        %v1097 = vsel %vm1096, %v1089, %v1091
        %v1098 = vsel %vm1096, %v1093, %v1095
        %v1103 = vmax.f32 %v1084, %v1097
        %v1104 = vmax.f32 %v1085, %v1091
        %v1105 = vmax.f32 %v1086, %v1098
        %v1106 = vmax.f32 %v1087, %v1095
        %1107 = vrot.lane.b32.xlu0 %v807, 110
        %v1108 = vpop.permute.xlu0 %1107
        %1109 = vrot.lane.b32.xlu0 %v808, 110
        %v1110 = vpop.permute.xlu0 %1109
        %1111 = vrot.lane.b32.xlu0 %v809, 110
        %v1112 = vpop.permute.xlu0 %1111
        %1113 = vrot.lane.b32.xlu0 %v810, 110
        %v1114 = vpop.permute.xlu0 %1113
        %vm1115 = vcmask 900096
        %v1116 = vsel %vm1115, %v1108, %v1110
        %v1117 = vsel %vm1115, %v1112, %v1114
        %v1122 = vmax.f32 %v1103, %v1116
        %v1123 = vmax.f32 %v1104, %v1110
        %v1124 = vmax.f32 %v1105, %v1117
        %v1125 = vmax.f32 %v1106, %v1114
        %1126 = vrot.lane.b32.xlu0 %v807, 96
        %v1127 = vpop.permute.xlu0 %1126
        %1128 = vrot.lane.b32.xlu0 %v808, 96
        %v1129 = vpop.permute.xlu0 %1128
        %1130 = vrot.lane.b32.xlu0 %v809, 96
        %v1131 = vpop.permute.xlu0 %1130
        %1132 = vrot.lane.b32.xlu0 %v810, 96
        %v1133 = vpop.permute.xlu0 %1132
        %vm1134 = vcmask 785408
        %v1135 = vsel %vm1134, %v1127, %v1129
        %v1136 = vsel %vm1134, %v1131, %v1133
        %v1141 = vmax.f32 %v1122, %v1135
        %v1142 = vmax.f32 %v1123, %v1129
        %v1143 = vmax.f32 %v1124, %v1136
        %v1144 = vmax.f32 %v1125, %v1133
        %1145 = vrot.lane.b32.xlu0 %v807, 95
        %v1146 = vpop.permute.xlu0 %1145
        %1147 = vrot.lane.b32.xlu0 %v808, 95
        %v1148 = vpop.permute.xlu0 %1147
        %1149 = vrot.lane.b32.xlu0 %v809, 95
        %v1150 = vpop.permute.xlu0 %1149
        %1151 = vrot.lane.b32.xlu0 %v810, 95
        %v1152 = vpop.permute.xlu0 %1151
        %vm1153 = vcmask 777216
        %v1154 = vsel %vm1153, %v1146, %v1148
        %v1155 = vsel %vm1153, %v1150, %v1152
        %v1160 = vmax.f32 %v1141, %v1154
        %v1161 = vmax.f32 %v1142, %v1148
        %v1162 = vmax.f32 %v1143, %v1155
        %v1163 = vmax.f32 %v1144, %v1152
        %1164 = vrot.lane.b32.xlu0 %v807, 94
        %v1165 = vpop.permute.xlu0 %1164
        %1166 = vrot.lane.b32.xlu0 %v808, 94
        %v1167 = vpop.permute.xlu0 %1166
        %1168 = vrot.lane.b32.xlu0 %v809, 94
        %v1169 = vpop.permute.xlu0 %1168
        %1170 = vrot.lane.b32.xlu0 %v810, 94
        %v1171 = vpop.permute.xlu0 %1170
        %vm1172 = vcmask 769024
        %v1173 = vsel %vm1172, %v1165, %v1167
        %v1174 = vsel %vm1172, %v1169, %v1171
        %v1179 = vmax.f32 %v1160, %v1173
        %v1180 = vmax.f32 %v1161, %v1167
        %v1181 = vmax.f32 %v1162, %v1174
        %v1182 = vmax.f32 %v1163, %v1171
        %v1183 = vld [vmem:[%s5] sm:$0xff]
        %v1184 = vld [vmem:[%s5 + $0x8] sm:$0xff]
        %v1185 = vld [vmem:[%s5 + $0x10] sm:$0xff]
        %v1186 = vld [vmem:[%s5 + $0x18] sm:$0xff]
        %v1187 = vld [vmem:[%s5 + $0x20] sm:$0xff]
        %v1188 = vld [vmem:[%s5 + $0x28] sm:$0xff]
        %v1189 = vld [vmem:[%s5 + $0x30] sm:$0xff]
        %v1190 = vld [vmem:[%s5 + $0x38] sm:$0xff]
        %v1191 = vld [vmem:[%s5 + $0x40] sm:$0xff]
        %v1192 = vld [vmem:[%s5 + $0x48] sm:$0xff]
        %v1193 = vld [vmem:[%s5 + $0x50] sm:$0xff]
        %v1194 = vld [vmem:[%s5 + $0x58] sm:$0xff]
        %v1195 = vld [vmem:[%s5 + $0x60] sm:$0xff]
        %v1196 = vld [vmem:[%s5 + $0x68] sm:$0xff]
        %v1197 = vld [vmem:[%s5 + $0x70] sm:$0xff]
        %v1198 = vld [vmem:[%s5 + $0x78] sm:$0xff]
        %v1199 = vld [vmem:[%s5 + $0x80] sm:$0xff]
        %v1200 = vld [vmem:[%s5 + $0x88] sm:$0xff]
        %v1201 = vld [vmem:[%s5 + $0x90] sm:$0xff]
        %v1202 = vld [vmem:[%s5 + $0x98] sm:$0xff]
        %v1203 = vld [vmem:[%s5 + $0xa0] sm:$0xff]
        %v1204 = vld [vmem:[%s5 + $0xa8] sm:$0xff]
        %v1205 = vld [vmem:[%s5 + $0xb0] sm:$0xff]
        %v1206 = vld [vmem:[%s5 + $0xb8] sm:$0xff]
        %v1207 = vld [vmem:[%s5 + $0xc0] sm:$0xff]
        %v1208 = vld [vmem:[%s5 + $0xc8] sm:$0xff]
        %v1209 = vld [vmem:[%s5 + $0xd0] sm:$0xff]
        %v1210 = vld [vmem:[%s5 + $0xd8] sm:$0x3f]
        %v1212 = vsel %vm1172, %v1180, 0
        %v1215 = vsel %vm1172, %v1182, 0
        %vm1217 = vcmask 1045504
        %v1219 = vsel %vm1217, %v1210, 0
        %1221 = vmatpush.msra.mxu0 %v1198
        %1222 = vmatpush.msra.mxu0 %v1197
        %1223 = vmatpush.msra.mxu0 %v1196
        %1224 = vmatpush.msra.mxu0 %v1195
        %1225 = vmatpush.msra.mxu0 %v1194
        %1226 = vmatpush.msra.mxu0 %v1193
        %1227 = vmatpush.msra.mxu0 %v1192
        %1228 = vmatpush.msra.mxu0 %v1191
        %1229 = vmatpush.msra.mxu0 %v1190
        %1230 = vmatpush.msra.mxu0 %v1189
        %1231 = vmatpush.msra.mxu0 %v1188
        %1232 = vmatpush.msra.mxu0 %v1187
        %1233 = vmatpush.msra.mxu0 %v1186
        %1234 = vmatpush.msra.mxu0 %v1185
        %1235 = vmatpush.msra.mxu0 %v1184
        %1236 = vmatpush.msra.mxu0 %v1183
        %1237 = vmatmul.f32.gmra.mxu0 %v1179
        %v1238 = vpop.f32.mrf.mxu0
        %v1239 = vadd.f32 0.0, %v1238
        %1240 = vmatmul.f32.gmra.mxu0 %v1181
        %v1241 = vpop.f32.mrf.mxu0
        %v1242 = vadd.f32 0.0, %v1241
        %1243 = vdwg.mxu0
        %1244 = vmatpush.msra.mxu0 0.0
        %1245 = vmatpush.msra.mxu0 0.0
        %1246 = vmatpush.msra.mxu0 0.0
        %1247 = vmatpush.msra.mxu0 0.0
        %1248 = vmatpush.msra.mxu0 %v1219
        %1249 = vmatpush.msra.mxu0 %v1209
        %1250 = vmatpush.msra.mxu0 %v1208
        %1251 = vmatpush.msra.mxu0 %v1207
        %1252 = vmatpush.msra.mxu0 %v1206
        %1253 = vmatpush.msra.mxu0 %v1205
        %1254 = vmatpush.msra.mxu0 %v1204
        %1255 = vmatpush.msra.mxu0 %v1203
        %1256 = vmatpush.msra.mxu0 %v1202
        %1257 = vmatpush.msra.mxu0 %v1201
        %1258 = vmatpush.msra.mxu0 %v1200
        %1259 = vmatpush.msra.mxu0 %v1199
        %1260 = vmatmul.f32.gmra.mxu0 %v1212
        %v1261 = vpop.f32.mrf.mxu0
        %v1262 = vadd.f32 %v1239, %v1261
        %1263 = vmatmul.f32.gmra.mxu0 %v1215
        %v1264 = vpop.f32.mrf.mxu0
        %v1265 = vadd.f32 %v1242, %v1264
        %1266 = vdwg.mxu0
        %v1267 = vld [vmem:[%s4] sm:$0xff]
        %v1268 = vld [vmem:[%s4 + $0x8] sm:$0xff]
        %v1269 = vld [vmem:[%s4 + $0x10] sm:$0xff]
        %v1270 = vld [vmem:[%s4 + $0x18] sm:$0xff]
        %v1271 = vld [vmem:[%s4 + $0x20] sm:$0xff]
        %v1272 = vld [vmem:[%s4 + $0x28] sm:$0xff]
        %v1273 = vld [vmem:[%s4 + $0x30] sm:$0xff]
        %v1274 = vld [vmem:[%s4 + $0x38] sm:$0xff]
        %v1275 = vld [vmem:[%s4 + $0x40] sm:$0xff]
        %v1276 = vld [vmem:[%s4 + $0x48] sm:$0xff]
        %v1277 = vld [vmem:[%s4 + $0x50] sm:$0xff]
        %v1278 = vld [vmem:[%s4 + $0x58] sm:$0xff]
        %v1279 = vld [vmem:[%s4 + $0x60] sm:$0xff]
        %v1280 = vld [vmem:[%s4 + $0x68] sm:$0xff]
        %v1281 = vld [vmem:[%s4 + $0x70] sm:$0xff]
        %v1282 = vld [vmem:[%s4 + $0x78] sm:$0xff]
        %v1283 = vld [vmem:[%s4 + $0x80] sm:$0xff]
        %v1284 = vld [vmem:[%s4 + $0x88] sm:$0xff]
        %v1285 = vld [vmem:[%s4 + $0x90] sm:$0xff]
        %v1286 = vld [vmem:[%s4 + $0x98] sm:$0xff]
        %v1287 = vld [vmem:[%s4 + $0xa0] sm:$0xff]
        %v1288 = vld [vmem:[%s4 + $0xa8] sm:$0xff]
        %v1289 = vld [vmem:[%s4 + $0xb0] sm:$0xff]
        %v1290 = vld [vmem:[%s4 + $0xb8] sm:$0xff]
        %v1291 = vld [vmem:[%s4 + $0xc0] sm:$0xff]
        %v1292 = vld [vmem:[%s4 + $0xc8] sm:$0xff]
        %v1293 = vld [vmem:[%s4 + $0xd0] sm:$0xff]
        %v1294 = vld [vmem:[%s4 + $0xd8] sm:$0xff]
        %v1295 = vld [vmem:[%s4 + $0xe0] sm:$0xff]
        %v1296 = vld [vmem:[%s4 + $0xe8] sm:$0xff]
        %v1297 = vld [vmem:[%s4 + $0xf0] sm:$0xff]
        %v1298 = vld [vmem:[%s4 + $0xf8] sm:$0xff]
        %1299 = vmatpush.msra.mxu0 %v1282
        %1300 = vmatpush.msra.mxu0 %v1281
        %1301 = vmatpush.msra.mxu0 %v1280
        %1302 = vmatpush.msra.mxu0 %v1279
        %1303 = vmatpush.msra.mxu0 %v1278
        %1304 = vmatpush.msra.mxu0 %v1277
        %1305 = vmatpush.msra.mxu0 %v1276
        %1306 = vmatpush.msra.mxu0 %v1275
        %1307 = vmatpush.msra.mxu0 %v1274
        %1308 = vmatpush.msra.mxu0 %v1273
        %1309 = vmatpush.msra.mxu0 %v1272
        %1310 = vmatpush.msra.mxu0 %v1271
        %1311 = vmatpush.msra.mxu0 %v1270
        %1312 = vmatpush.msra.mxu0 %v1269
        %1313 = vmatpush.msra.mxu0 %v1268
        %1314 = vmatpush.msra.mxu0 %v1267
        %1315 = vmatmul.f32.gmra.mxu0 %v807
        %v1316 = vpop.f32.mrf.mxu0
        %v1317 = vadd.f32 0.0, %v1316
        %1318 = vmatmul.f32.gmra.mxu0 %v809
        %v1319 = vpop.f32.mrf.mxu0
        %v1320 = vadd.f32 0.0, %v1319
        %1321 = vdwg.mxu0
        %1322 = vmatpush.msra.mxu0 %v1298
        %1323 = vmatpush.msra.mxu0 %v1297
        %1324 = vmatpush.msra.mxu0 %v1296
        %1325 = vmatpush.msra.mxu0 %v1295
        %1326 = vmatpush.msra.mxu0 %v1294
        %1327 = vmatpush.msra.mxu0 %v1293
        %1328 = vmatpush.msra.mxu0 %v1292
        %1329 = vmatpush.msra.mxu0 %v1291
        %1330 = vmatpush.msra.mxu0 %v1290
        %1331 = vmatpush.msra.mxu0 %v1289
        %1332 = vmatpush.msra.mxu0 %v1288
        %1333 = vmatpush.msra.mxu0 %v1287
        %1334 = vmatpush.msra.mxu0 %v1286
        %1335 = vmatpush.msra.mxu0 %v1285
        %1336 = vmatpush.msra.mxu0 %v1284
        %1337 = vmatpush.msra.mxu0 %v1283
        %1338 = vmatmul.f32.gmra.mxu0 %v808
        %v1339 = vpop.f32.mrf.mxu0
        %v1340 = vadd.f32 %v1317, %v1339
        %1341 = vmatmul.f32.gmra.mxu0 %v810
        %v1342 = vpop.f32.mrf.mxu0
        %v1343 = vadd.f32 %v1320, %v1342
        %1344 = vdwg.mxu0
        %v1345 = vld [vmem:[%s6] sm:$0x3]
        %v1346 = vld [vmem:[%s7] sm:$0x3]
        %1348 = vset.pattern.permute.xlu0 0
        %1349 = vperm.xlu0 %1348, %v1346
        %v1350 = vpop.permute.xlu0 %1349
        %v1353 = vsel %vm879, %v1345, 0
        %1355 = vmatpush.msra.mxu0 0.0
        %1356 = vmatpush.msra.mxu0 0.0
        %1357 = vmatpush.msra.mxu0 0.0
        %1358 = vmatpush.msra.mxu0 0.0
        %1359 = vmatpush.msra.mxu0 0.0
        %1360 = vmatpush.msra.mxu0 0.0
        %1361 = vmatpush.msra.mxu0 0.0
        %1362 = vmatpush.msra.mxu0 0.0
        %1363 = vmatpush.msra.mxu0 0.0
        %1364 = vmatpush.msra.mxu0 0.0
        %1365 = vmatpush.msra.mxu0 0.0
        %1366 = vmatpush.msra.mxu0 0.0
        %1367 = vmatpush.msra.mxu0 0.0
        %1368 = vmatpush.msra.mxu0 0.0
        %1369 = vmatpush.msra.mxu0 %v1265
        %1370 = vmatpush.msra.mxu0 %v1262
        %1371 = vmatmul.f32.gmra.mxu0 %v1353
        %v1372 = vpop.f32.mrf.mxu0
        %v1373 = vadd.f32 %v1350, %v1372
        %1374 = vdwg.mxu0
        %1375 = vmatpush.msra.mxu0 0.0
        %1376 = vmatpush.msra.mxu0 0.0
        %1377 = vmatpush.msra.mxu0 0.0
        %1378 = vmatpush.msra.mxu0 0.0
        %1379 = vmatpush.msra.mxu0 0.0
        %1380 = vmatpush.msra.mxu0 0.0
        %1381 = vmatpush.msra.mxu0 0.0
        %1382 = vmatpush.msra.mxu0 0.0
        %1383 = vmatpush.msra.mxu0 0.0
        %1384 = vmatpush.msra.mxu0 0.0
        %1385 = vmatpush.msra.mxu0 0.0
        %1386 = vmatpush.msra.mxu0 0.0
        %1387 = vmatpush.msra.mxu0 0.0
        %1388 = vmatpush.msra.mxu0 0.0
        %1389 = vmatpush.msra.mxu0 %v1343
        %1390 = vmatpush.msra.mxu0 %v1340
        %1391 = vmatmul.f32.gmra.mxu0 %v1353
        %v1392 = vpop.f32.mrf.mxu0
        %v1393 = vadd.f32 %v1350, %v1392
        %1394 = vdwg.mxu0
        %v1395 = vld [vmem:[%s9] sm:$0x1]
        %v1396 = vld [vmem:[#allocation4] sm:$0xf]
        %vm1397 = vcmask 31744
        %v1399 = vsel %vm1397, %v1373, 0
        %vm1401 = vcmask 1043456
        %v1403 = vsel %vm1401, %v1396, 0
        %1405 = vmatpush.msra.mxu0 0.0
        %1406 = vmatpush.msra.mxu0 0.0
        %1407 = vmatpush.msra.mxu0 0.0
        %1408 = vmatpush.msra.mxu0 0.0
        %1409 = vmatpush.msra.mxu0 0.0
        %1410 = vmatpush.msra.mxu0 0.0
        %1411 = vmatpush.msra.mxu0 0.0
        %1412 = vmatpush.msra.mxu0 0.0
        %1413 = vmatpush.msra.mxu0 0.0
        %1414 = vmatpush.msra.mxu0 0.0
        %1415 = vmatpush.msra.mxu0 0.0
        %1416 = vmatpush.msra.mxu0 0.0
        %1417 = vmatpush.msra.mxu0 0.0
        %1418 = vmatpush.msra.mxu0 0.0
        %1419 = vmatpush.msra.mxu0 0.0
        %1420 = vmatpush.msra.mxu0 %v1403
        %1421 = vmatmul.f32.gmra.mxu0 %v1399
        %v1422 = vpop.f32.mrf.mxu0
        %v1423 = vadd.f32 0.0, %v1422
        %1424 = vdwg.mxu0
        %v1425 = vadd.f32 %v1395, %v1423
        %s1426 = scalar_lea.vmem [#allocation4], 4
        %v1427 = vld [vmem:[%s1426] sm:$0xf]
        %v1428 = vrot.slane %v1373, 1
        %v1429 = vsel %vm1397, %v1428, 0
        %v1432 = vsel %vm1401, %v1427, 0
        %1434 = vmatpush.msra.mxu0 0.0
        %1435 = vmatpush.msra.mxu0 0.0
        %1436 = vmatpush.msra.mxu0 0.0
        %1437 = vmatpush.msra.mxu0 0.0
        %1438 = vmatpush.msra.mxu0 0.0
        %1439 = vmatpush.msra.mxu0 0.0
        %1440 = vmatpush.msra.mxu0 0.0
        %1441 = vmatpush.msra.mxu0 0.0
        %1442 = vmatpush.msra.mxu0 0.0
        %1443 = vmatpush.msra.mxu0 0.0
        %1444 = vmatpush.msra.mxu0 0.0
        %1445 = vmatpush.msra.mxu0 0.0
        %1446 = vmatpush.msra.mxu0 0.0
        %1447 = vmatpush.msra.mxu0 0.0
        %1448 = vmatpush.msra.mxu0 0.0
        %1449 = vmatpush.msra.mxu0 %v1432
        %1450 = vmatmul.f32.gmra.mxu0 %v1429
        %v1451 = vpop.f32.mrf.mxu0
        %v1452 = vadd.f32 0.0, %v1451
        %1453 = vdwg.mxu0
        %v1454 = vadd.f32 %v1425, %v1452
        %v1455 = vmax.f32 %v1454, 0.0
        %v1456 = vld [vmem:[#allocation6] sm:$0xff]
        %v1457 = vld [vmem:[#allocation6 + $0x8] sm:$0xff]
        %v1458 = vld [vmem:[%s11] sm:$0x1]
        %v1460 = vsel %vm879, %v1455, 0
        %1462 = vmatpush.msra.mxu0 0.0
        %1463 = vmatpush.msra.mxu0 0.0
        %1464 = vmatpush.msra.mxu0 0.0
        %1465 = vmatpush.msra.mxu0 0.0
        %1466 = vmatpush.msra.mxu0 0.0
        %1467 = vmatpush.msra.mxu0 0.0
        %1468 = vmatpush.msra.mxu0 0.0
        %1469 = vmatpush.msra.mxu0 0.0
        %1470 = vmatpush.msra.mxu0 0.0
        %1471 = vmatpush.msra.mxu0 0.0
        %1472 = vmatpush.msra.mxu0 0.0
        %1473 = vmatpush.msra.mxu0 0.0
        %1474 = vmatpush.msra.mxu0 0.0
        %1475 = vmatpush.msra.mxu0 0.0
        %1476 = vmatpush.msra.mxu0 %v1457
        %1477 = vmatpush.msra.mxu0 %v1456
        %1478 = vmatmul.f32.gmra.mxu0 %v1460
        %v1479 = vpop.f32.mrf.mxu0
        %v1480 = vadd.f32 %v1458, %v1479
        %1481 = vdwg.mxu0
        %v1483 = vsel %vm1397, %v1393, 0
        %1485 = vmatpush.msra.mxu0 0.0
        %1486 = vmatpush.msra.mxu0 0.0
        %1487 = vmatpush.msra.mxu0 0.0
        %1488 = vmatpush.msra.mxu0 0.0
        %1489 = vmatpush.msra.mxu0 0.0
        %1490 = vmatpush.msra.mxu0 0.0
        %1491 = vmatpush.msra.mxu0 0.0
        %1492 = vmatpush.msra.mxu0 0.0
        %1493 = vmatpush.msra.mxu0 0.0
        %1494 = vmatpush.msra.mxu0 0.0
        %1495 = vmatpush.msra.mxu0 0.0
        %1496 = vmatpush.msra.mxu0 0.0
        %1497 = vmatpush.msra.mxu0 0.0
        %1498 = vmatpush.msra.mxu0 0.0
        %1499 = vmatpush.msra.mxu0 0.0
        %1500 = vmatpush.msra.mxu0 %v1403
        %1501 = vmatmul.f32.gmra.mxu0 %v1483
        %v1502 = vpop.f32.mrf.mxu0
        %v1503 = vadd.f32 0.0, %v1502
        %1504 = vdwg.mxu0
        %v1505 = vadd.f32 %v1395, %v1503
        %v1506 = vrot.slane %v1393, 1
        %v1507 = vsel %vm1397, %v1506, 0
        %1509 = vmatpush.msra.mxu0 0.0
        %1510 = vmatpush.msra.mxu0 0.0
        %1511 = vmatpush.msra.mxu0 0.0
        %1512 = vmatpush.msra.mxu0 0.0
        %1513 = vmatpush.msra.mxu0 0.0
        %1514 = vmatpush.msra.mxu0 0.0
        %1515 = vmatpush.msra.mxu0 0.0
        %1516 = vmatpush.msra.mxu0 0.0
        %1517 = vmatpush.msra.mxu0 0.0
        %1518 = vmatpush.msra.mxu0 0.0
        %1519 = vmatpush.msra.mxu0 0.0
        %1520 = vmatpush.msra.mxu0 0.0
        %1521 = vmatpush.msra.mxu0 0.0
        %1522 = vmatpush.msra.mxu0 0.0
        %1523 = vmatpush.msra.mxu0 0.0
        %1524 = vmatpush.msra.mxu0 %v1432
        %1525 = vmatmul.f32.gmra.mxu0 %v1507
        %v1526 = vpop.f32.mrf.mxu0
        %v1527 = vadd.f32 0.0, %v1526
        %1528 = vdwg.mxu0
        %v1529 = vadd.f32 %v1505, %v1527
        %v1530 = vmax.f32 %v1529, 0.0
        %v1532 = vsel %vm879, %v1530, 0
        %1534 = vmatpush.msra.mxu0 0.0
        %1535 = vmatpush.msra.mxu0 0.0
        %1536 = vmatpush.msra.mxu0 0.0
        %1537 = vmatpush.msra.mxu0 0.0
        %1538 = vmatpush.msra.mxu0 0.0
        %1539 = vmatpush.msra.mxu0 0.0
        %1540 = vmatpush.msra.mxu0 0.0
        %1541 = vmatpush.msra.mxu0 0.0
        %1542 = vmatpush.msra.mxu0 0.0
        %1543 = vmatpush.msra.mxu0 0.0
        %1544 = vmatpush.msra.mxu0 0.0
        %1545 = vmatpush.msra.mxu0 0.0
        %1546 = vmatpush.msra.mxu0 0.0
        %1547 = vmatpush.msra.mxu0 0.0
        %1548 = vmatpush.msra.mxu0 %v1457
        %1549 = vmatpush.msra.mxu0 %v1456
        %1550 = vmatmul.f32.gmra.mxu0 %v1532
        %v1551 = vpop.f32.mrf.mxu0
        %v1552 = vadd.f32 %v1458, %v1551
        %1553 = vdwg.mxu0
        %v1554 = vadd.f32 %v1480, %v1552
        %v1556 = vrot.slane %v1554, 7
        %1557 = vrot.lane.b32.xlu0 %v1556, 64
        %v1558 = vpop.permute.xlu0 %1557
        %vm1560 = vcmask 1040384
        %v1561 = vsel %vm1560, %v1554, %v1558
        %v1562 = vld [vmem:[%s12] sm:$0xff]
        %v1563 = vld [vmem:[%s12 + $0x8] sm:$0xff]
        %vm1564 = vcmask 15360
        %v1566 = vsel %vm1564, %v1562, 0
        %v1569 = vsel %vm1564, %v1563, 0
        %vm1571 = vcmask 1041408
        %v1573 = vsel %vm1571, %v1561, 0
        %1575 = vmatpush.msra.mxu0 0.0
        %1576 = vmatpush.msra.mxu0 0.0
        %1577 = vmatpush.msra.mxu0 0.0
        %1578 = vmatpush.msra.mxu0 0.0
        %1579 = vmatpush.msra.mxu0 0.0
        %1580 = vmatpush.msra.mxu0 0.0
        %1581 = vmatpush.msra.mxu0 0.0
        %1582 = vmatpush.msra.mxu0 0.0
        %1583 = vmatpush.msra.mxu0 0.0
        %1584 = vmatpush.msra.mxu0 0.0
        %1585 = vmatpush.msra.mxu0 0.0
        %1586 = vmatpush.msra.mxu0 0.0
        %1587 = vmatpush.msra.mxu0 0.0
        %1588 = vmatpush.msra.mxu0 0.0
        %1589 = vmatpush.msra.mxu0 0.0
        %1590 = vmatpush.msra.mxu0 %v1573
        %1591 = vmatmul.f32.gmra.mxu0 %v1566
        %v1592 = vpop.f32.mrf.mxu0
        %v1593 = vadd.f32 0.0, %v1592
        %1594 = vmatmul.f32.gmra.mxu0 %v1569
        %v1595 = vpop.f32.mrf.mxu0
        %v1596 = vadd.f32 0.0, %v1595
        %1597 = vdwg.mxu0
        %v1598 = vld [vmem:[#allocation7] sm:$0xff]
        %v1599 = vld [vmem:[#allocation7 + $0x8] sm:$0xff]
        %v1600 = vld [vmem:[#allocation7 + $0x10] sm:$0xff]
        %v1601 = vld [vmem:[#allocation7 + $0x18] sm:$0xff]
        %v1602 = vld [vmem:[#allocation7 + $0x20] sm:$0xff]
        %v1603 = vld [vmem:[#allocation7 + $0x28] sm:$0xff]
        %v1604 = vld [vmem:[#allocation7 + $0x30] sm:$0xff]
        %v1605 = vld [vmem:[#allocation7 + $0x38] sm:$0xff]
        %v1606 = vld [vmem:[#allocation7 + $0x40] sm:$0xff]
        %v1607 = vld [vmem:[#allocation7 + $0x48] sm:$0xff]
        %v1608 = vld [vmem:[#allocation7 + $0x50] sm:$0xff]
        %v1609 = vld [vmem:[#allocation7 + $0x58] sm:$0xff]
        %v1610 = vld [vmem:[#allocation7 + $0x60] sm:$0xff]
        %v1611 = vld [vmem:[#allocation7 + $0x68] sm:$0xff]
        %v1612 = vld [vmem:[#allocation7 + $0x70] sm:$0xff]
        %v1613 = vld [vmem:[#allocation7 + $0x78] sm:$0xff]
        %v1614 = vld [vmem:[%s13] sm:$0xff]
        %v1615 = vld [vmem:[%s13 + $0x8] sm:$0xff]
        %1617 = vset.pattern.permute.xlu0 0
        %1618 = vperm.xlu0 %1617, %v1614
        %v1619 = vpop.permute.xlu0 %1618
        %1622 = vset.pattern.permute.xlu0 0
        %1623 = vperm.xlu0 %1622, %v1615
        %v1624 = vpop.permute.xlu0 %1623
        %vm1626 = vcmask 523264
        %v1628 = vsel %vm1626, %v1593, 0
        %v1631 = vsel %vm1626, %v1596, 0
        %1633 = vmatpush.msra.mxu0 0.0
        %1634 = vmatpush.msra.mxu0 0.0
        %1635 = vmatpush.msra.mxu0 0.0
        %1636 = vmatpush.msra.mxu0 0.0
        %1637 = vmatpush.msra.mxu0 0.0
        %1638 = vmatpush.msra.mxu0 0.0
        %1639 = vmatpush.msra.mxu0 0.0
        %1640 = vmatpush.msra.mxu0 0.0
        %1641 = vmatpush.msra.mxu0 %v1612
        %1642 = vmatpush.msra.mxu0 %v1610
        %1643 = vmatpush.msra.mxu0 %v1608
        %1644 = vmatpush.msra.mxu0 %v1606
        %1645 = vmatpush.msra.mxu0 %v1604
        %1646 = vmatpush.msra.mxu0 %v1602
        %1647 = vmatpush.msra.mxu0 %v1600
        %1648 = vmatpush.msra.mxu0 %v1598
        %1649 = vmatmul.f32.gmra.mxu0 %v1628
        %v1650 = vpop.f32.mrf.mxu0
        %v1651 = vadd.f32 %v1619, %v1650
        %1652 = vmatmul.f32.gmra.mxu0 %v1631
        %v1653 = vpop.f32.mrf.mxu0
        %v1654 = vadd.f32 %v1624, %v1653
        %1655 = vdwg.mxu0
        %1656 = vmatpush.msra.mxu0 0.0
        %1657 = vmatpush.msra.mxu0 0.0
        %1658 = vmatpush.msra.mxu0 0.0
        %1659 = vmatpush.msra.mxu0 0.0
        %1660 = vmatpush.msra.mxu0 0.0
        %1661 = vmatpush.msra.mxu0 0.0
        %1662 = vmatpush.msra.mxu0 0.0
        %1663 = vmatpush.msra.mxu0 0.0
        %1664 = vmatpush.msra.mxu0 %v1613
        %1665 = vmatpush.msra.mxu0 %v1611
        %1666 = vmatpush.msra.mxu0 %v1609
        %1667 = vmatpush.msra.mxu0 %v1607
        %1668 = vmatpush.msra.mxu0 %v1605
        %1669 = vmatpush.msra.mxu0 %v1603
        %1670 = vmatpush.msra.mxu0 %v1601
        %1671 = vmatpush.msra.mxu0 %v1599
        %1672 = vmatmul.f32.gmra.mxu0 %v1628
        %v1673 = vpop.f32.mrf.mxu0
        %v1674 = vadd.f32 %v1619, %v1673
        %1675 = vmatmul.f32.gmra.mxu0 %v1631
        %v1676 = vpop.f32.mrf.mxu0
        %v1677 = vadd.f32 %v1624, %v1676
        %1678 = vdwg.mxu0
        %v1679 = vsub.f32 0.0, %v1651
        %v1680 = vsub.f32 0.0, %v1674
        %v1681 = vsub.f32 0.0, %v1654
        %v1682 = vsub.f32 0.0, %v1677
        %v1683 = vmul.f32 %v1679, 1.442695
        %v1684 = vpow.pop %v1683
        %v1685 = vmul.f32 %v1680, 1.442695
        %v1686 = vpow.pop %v1685
        %v1687 = vmul.f32 %v1681, 1.442695
        %v1688 = vpow.pop %v1687
        %v1689 = vmul.f32 %v1682, 1.442695
        %v1690 = vpow.pop %v1689
        %v1691 = vadd.f32 %v1684, 1.0
        %v1692 = vadd.f32 %v1686, 1.0
        %v1693 = vadd.f32 %v1688, 1.0
        %v1694 = vadd.f32 %v1690, 1.0
        %v1695 = vrcp.pop %v1691
        %v1696 = vrcp.pop %v1692
        %v1697 = vrcp.pop %v1693
        %v1698 = vrcp.pop %v1694
        %v1699 = vmul.f32 %v1695, %v807
        %v1700 = vmul.f32 %v1696, %v808
        %v1701 = vmul.f32 %v1697, %v809
        %v1702 = vmul.f32 %v1698, %v810
        %v1703 = vld [vmem:[%s15] sm:$0xff]
        %v1704 = vld [vmem:[%s15 + $0x8] sm:$0xff]
        %v1705 = vld [vmem:[%s15 + $0x10] sm:$0xff]
        %v1706 = vld [vmem:[%s15 + $0x18] sm:$0xff]
        %v1707 = vld [vmem:[%s15 + $0x20] sm:$0xff]
        %v1708 = vld [vmem:[%s15 + $0x28] sm:$0xff]
        %v1709 = vld [vmem:[%s15 + $0x30] sm:$0xff]
        %v1710 = vld [vmem:[%s15 + $0x38] sm:$0xff]
        %v1711 = vld [vmem:[%s15 + $0x40] sm:$0xff]
        %v1712 = vld [vmem:[%s15 + $0x48] sm:$0xff]
        %v1713 = vld [vmem:[%s15 + $0x50] sm:$0xff]
        %v1714 = vld [vmem:[%s15 + $0x58] sm:$0xff]
        %v1715 = vld [vmem:[%s15 + $0x60] sm:$0xff]
        %v1716 = vld [vmem:[%s15 + $0x68] sm:$0xff]
        %v1717 = vld [vmem:[%s15 + $0x70] sm:$0xff]
        %v1718 = vld [vmem:[%s15 + $0x78] sm:$0xff]
        %v1719 = vld [vmem:[%s15 + $0x80] sm:$0xff]
        %v1720 = vld [vmem:[%s15 + $0x88] sm:$0xff]
        %v1721 = vld [vmem:[%s15 + $0x90] sm:$0xff]
        %v1722 = vld [vmem:[%s15 + $0x98] sm:$0xff]
        %v1723 = vld [vmem:[%s15 + $0xa0] sm:$0xff]
        %v1724 = vld [vmem:[%s15 + $0xa8] sm:$0xff]
        %v1725 = vld [vmem:[%s15 + $0xb0] sm:$0xff]
        %v1726 = vld [vmem:[%s15 + $0xb8] sm:$0xff]
        %v1727 = vld [vmem:[%s15 + $0xc0] sm:$0xff]
        %v1728 = vld [vmem:[%s15 + $0xc8] sm:$0xff]
        %v1729 = vld [vmem:[%s15 + $0xd0] sm:$0xff]
        %v1730 = vld [vmem:[%s15 + $0xd8] sm:$0xff]
        %v1731 = vld [vmem:[%s15 + $0xe0] sm:$0xff]
        %v1732 = vld [vmem:[%s15 + $0xe8] sm:$0xff]
        %v1733 = vld [vmem:[%s15 + $0xf0] sm:$0xff]
        %v1734 = vld [vmem:[%s15 + $0xf8] sm:$0xff]
        %1735 = vmatpush.msra.mxu0 %v1718
        %1736 = vmatpush.msra.mxu0 %v1717
        %1737 = vmatpush.msra.mxu0 %v1716
        %1738 = vmatpush.msra.mxu0 %v1715
        %1739 = vmatpush.msra.mxu0 %v1714
        %1740 = vmatpush.msra.mxu0 %v1713
        %1741 = vmatpush.msra.mxu0 %v1712
        %1742 = vmatpush.msra.mxu0 %v1711
        %1743 = vmatpush.msra.mxu0 %v1710
        %1744 = vmatpush.msra.mxu0 %v1709
        %1745 = vmatpush.msra.mxu0 %v1708
        %1746 = vmatpush.msra.mxu0 %v1707
        %1747 = vmatpush.msra.mxu0 %v1706
        %1748 = vmatpush.msra.mxu0 %v1705
        %1749 = vmatpush.msra.mxu0 %v1704
        %1750 = vmatpush.msra.mxu0 %v1703
        %1751 = vmatmul.f32.gmra.mxu0 %v1699
        %v1752 = vpop.f32.mrf.mxu0
        %v1753 = vadd.f32 0.0, %v1752
        %1754 = vmatmul.f32.gmra.mxu0 %v1701
        %v1755 = vpop.f32.mrf.mxu0
        %v1756 = vadd.f32 0.0, %v1755
        %1757 = vdwg.mxu0
        %1758 = vmatpush.msra.mxu0 %v1734
        %1759 = vmatpush.msra.mxu0 %v1733
        %1760 = vmatpush.msra.mxu0 %v1732
        %1761 = vmatpush.msra.mxu0 %v1731
        %1762 = vmatpush.msra.mxu0 %v1730
        %1763 = vmatpush.msra.mxu0 %v1729
        %1764 = vmatpush.msra.mxu0 %v1728
        %1765 = vmatpush.msra.mxu0 %v1727
        %1766 = vmatpush.msra.mxu0 %v1726
        %1767 = vmatpush.msra.mxu0 %v1725
        %1768 = vmatpush.msra.mxu0 %v1724
        %1769 = vmatpush.msra.mxu0 %v1723
        %1770 = vmatpush.msra.mxu0 %v1722
        %1771 = vmatpush.msra.mxu0 %v1721
        %1772 = vmatpush.msra.mxu0 %v1720
        %1773 = vmatpush.msra.mxu0 %v1719
        %1774 = vmatmul.f32.gmra.mxu0 %v1700
        %v1775 = vpop.f32.mrf.mxu0
        %v1776 = vadd.f32 %v1753, %v1775
        %1777 = vmatmul.f32.gmra.mxu0 %v1702
        %v1778 = vpop.f32.mrf.mxu0
        %v1779 = vadd.f32 %v1756, %v1778
        %1780 = vdwg.mxu0
        %1783 = vrot.lane.b32.xlu0 %v1776, 127
        %v1784 = vpop.permute.xlu0 %1783
        %1785 = vrot.lane.b32.xlu0 %v1779, 127
        %v1786 = vpop.permute.xlu0 %1785
        %v1789 = vmax.f32 %v1776, %v1784
        %v1790 = vmax.f32 %v1779, %v1786
        %1791 = vrot.lane.b32.xlu0 %v1776, 126
        %v1792 = vpop.permute.xlu0 %1791
        %1793 = vrot.lane.b32.xlu0 %v1779, 126
        %v1794 = vpop.permute.xlu0 %1793
        %v1797 = vmax.f32 %v1789, %v1792
        %v1798 = vmax.f32 %v1790, %v1794
        %1799 = vrot.lane.b32.xlu0 %v1776, 121
        %v1800 = vpop.permute.xlu0 %1799
        %1801 = vrot.lane.b32.xlu0 %v1779, 121
        %v1802 = vpop.permute.xlu0 %1801
        %v1805 = vmax.f32 %v1797, %v1800
        %v1806 = vmax.f32 %v1798, %v1802
        %1807 = vrot.lane.b32.xlu0 %v1776, 120
        %v1808 = vpop.permute.xlu0 %1807
        %1809 = vrot.lane.b32.xlu0 %v1779, 120
        %v1810 = vpop.permute.xlu0 %1809
        %v1813 = vmax.f32 %v1805, %v1808
        %v1814 = vmax.f32 %v1806, %v1810
        %1815 = vrot.lane.b32.xlu0 %v1776, 119
        %v1816 = vpop.permute.xlu0 %1815
        %1817 = vrot.lane.b32.xlu0 %v1779, 119
        %v1818 = vpop.permute.xlu0 %1817
        %v1821 = vmax.f32 %v1813, %v1816
        %v1822 = vmax.f32 %v1814, %v1818
        %1823 = vrot.lane.b32.xlu0 %v1776, 114
        %v1824 = vpop.permute.xlu0 %1823
        %1825 = vrot.lane.b32.xlu0 %v1779, 114
        %v1826 = vpop.permute.xlu0 %1825
        %v1829 = vmax.f32 %v1821, %v1824
        %v1830 = vmax.f32 %v1822, %v1826
        %1831 = vrot.lane.b32.xlu0 %v1776, 113
        %v1832 = vpop.permute.xlu0 %1831
        %1833 = vrot.lane.b32.xlu0 %v1779, 113
        %v1834 = vpop.permute.xlu0 %1833
        %v1837 = vmax.f32 %v1829, %v1832
        %v1838 = vmax.f32 %v1830, %v1834
        %1839 = vrot.lane.b32.xlu0 %v1776, 112
        %v1840 = vpop.permute.xlu0 %1839
        %1841 = vrot.lane.b32.xlu0 %v1779, 112
        %v1842 = vpop.permute.xlu0 %1841
        %v1845 = vmax.f32 %v1837, %v1840
        %v1846 = vmax.f32 %v1838, %v1842
        %v1847 = vld [vmem:[#allocation9] sm:$0xff]
        %v1848 = vld [vmem:[#allocation9 + $0x8] sm:$0xff]
        %v1849 = vld [vmem:[#allocation9 + $0x10] sm:$0xff]
        %v1850 = vld [vmem:[#allocation9 + $0x18] sm:$0xff]
        %v1851 = vld [vmem:[#allocation9 + $0x20] sm:$0x1]
        %vm1852 = vcmask 269312
        %v1854 = vsel %vm1852, %v1845, 0
        %v1857 = vsel %vm1852, %v1846, 0
        %v1860 = vsel %vm1560, %v1851, 0
        %1862 = vmatpush.msra.mxu0 0.0
        %1863 = vmatpush.msra.mxu0 0.0
        %1864 = vmatpush.msra.mxu0 0.0
        %1865 = vmatpush.msra.mxu0 0.0
        %1866 = vmatpush.msra.mxu0 0.0
        %1867 = vmatpush.msra.mxu0 0.0
        %1868 = vmatpush.msra.mxu0 0.0
        %1869 = vmatpush.msra.mxu0 0.0
        %1870 = vmatpush.msra.mxu0 0.0
        %1871 = vmatpush.msra.mxu0 0.0
        %1872 = vmatpush.msra.mxu0 0.0
        %1873 = vmatpush.msra.mxu0 %v1860
        %1874 = vmatpush.msra.mxu0 %v1850
        %1875 = vmatpush.msra.mxu0 %v1849
        %1876 = vmatpush.msra.mxu0 %v1848
        %1877 = vmatpush.msra.mxu0 %v1847
        %1878 = vmatmul.f32.gmra.mxu0 %v1854
        %v1879 = vpop.f32.mrf.mxu0
        %v1880 = vadd.f32 0.0, %v1879
        %1881 = vmatmul.f32.gmra.mxu0 %v1857
        %v1882 = vpop.f32.mrf.mxu0
        %v1883 = vadd.f32 0.0, %v1882
        %1884 = vdwg.mxu0
        %v1885 = vld [vmem:[%s18] sm:$0xff]
        %v1886 = vld [vmem:[%s18 + $0x8] sm:$0xff]
        %v1887 = vld [vmem:[%s18 + $0x10] sm:$0xff]
        %v1888 = vld [vmem:[%s18 + $0x18] sm:$0xff]
        %v1889 = vld [vmem:[%s18 + $0x20] sm:$0xff]
        %v1890 = vld [vmem:[%s18 + $0x28] sm:$0xff]
        %v1892 = vsel %vm879, %v1885, 0
        %v1895 = vsel %vm879, %v1886, 0
        %v1898 = vsel %vm879, %v1887, 0
        %v1901 = vsel %vm879, %v1888, 0
        %v1904 = vsel %vm879, %v1889, 0
        %v1907 = vsel %vm879, %v1890, 0
        %1909 = vmatpush.msra.mxu0 0.0
        %1910 = vmatpush.msra.mxu0 0.0
        %1911 = vmatpush.msra.mxu0 0.0
        %1912 = vmatpush.msra.mxu0 0.0
        %1913 = vmatpush.msra.mxu0 0.0
        %1914 = vmatpush.msra.mxu0 0.0
        %1915 = vmatpush.msra.mxu0 0.0
        %1916 = vmatpush.msra.mxu0 0.0
        %1917 = vmatpush.msra.mxu0 0.0
        %1918 = vmatpush.msra.mxu0 0.0
        %1919 = vmatpush.msra.mxu0 0.0
        %1920 = vmatpush.msra.mxu0 0.0
        %1921 = vmatpush.msra.mxu0 0.0
        %1922 = vmatpush.msra.mxu0 0.0
        %1923 = vmatpush.msra.mxu0 %v1883
        %1924 = vmatpush.msra.mxu0 %v1880
        %1925 = vmatmul.f32.gmra.mxu0 %v1892
        %v1926 = vpop.f32.mrf.mxu0
        %v1927 = vadd.f32 0.0, %v1926
        %1928 = vmatmul.f32.gmra.mxu0 %v1895
        %v1929 = vpop.f32.mrf.mxu0
        %v1930 = vadd.f32 0.0, %v1929
        %1931 = vmatmul.f32.gmra.mxu0 %v1898
        %v1932 = vpop.f32.mrf.mxu0
        %v1933 = vadd.f32 0.0, %v1932
        %1934 = vmatmul.f32.gmra.mxu0 %v1901
        %v1935 = vpop.f32.mrf.mxu0
        %v1936 = vadd.f32 0.0, %v1935
        %1937 = vmatmul.f32.gmra.mxu0 %v1904
        %v1938 = vpop.f32.mrf.mxu0
        %v1939 = vadd.f32 0.0, %v1938
        %1940 = vmatmul.f32.gmra.mxu0 %v1907
        %v1941 = vpop.f32.mrf.mxu0
        %v1942 = vadd.f32 0.0, %v1941
        %1943 = vdwg.mxu0
        %v1944 = vld [vmem:[%s17] sm:$0xff]
        %v1945 = vld [vmem:[%s17 + $0x8] sm:$0x1]
        %vm1946 = vcmask 72704
        %v1948 = vsel %vm1946, %v1927, 0
        %v1951 = vsel %vm1946, %v1930, 0
        %v1954 = vsel %vm1560, %v1945, 0
        %1956 = vmatpush.msra.mxu0 0.0
        %1957 = vmatpush.msra.mxu0 0.0
        %1958 = vmatpush.msra.mxu0 0.0
        %1959 = vmatpush.msra.mxu0 0.0
        %1960 = vmatpush.msra.mxu0 0.0
        %1961 = vmatpush.msra.mxu0 0.0
        %1962 = vmatpush.msra.mxu0 0.0
        %1963 = vmatpush.msra.mxu0 0.0
        %1964 = vmatpush.msra.mxu0 0.0
        %1965 = vmatpush.msra.mxu0 0.0
        %1966 = vmatpush.msra.mxu0 0.0
        %1967 = vmatpush.msra.mxu0 0.0
        %1968 = vmatpush.msra.mxu0 0.0
        %1969 = vmatpush.msra.mxu0 0.0
        %1970 = vmatpush.msra.mxu0 %v1954
        %1971 = vmatpush.msra.mxu0 %v1944
        %1972 = vmatmul.f32.gmra.mxu0 %v1948
        %v1973 = vpop.f32.mrf.mxu0
        %v1974 = vadd.f32 0.0, %v1973
        %1975 = vmatmul.f32.gmra.mxu0 %v1951
        %v1976 = vpop.f32.mrf.mxu0
        %v1977 = vadd.f32 0.0, %v1976
        %1978 = vdwg.mxu0
        %v1979 = vmul.f32 %v1974, %v1933
        %v1980 = vmul.f32 %v1977, %v1936
        %v1981 = vsel %vm1946, %v1979, -inf
        %v1982 = vsel %vm1946, %v1980, -inf
        %v1983 = vmax.f32 %v1981, %v1982
        %v1984 = vrot.slane %v1983, 4
        %v1985 = vmax.f32 %v1983, %v1984
        %v1986 = vrot.slane %v1985, 2
        %v1987 = vmax.f32 %v1985, %v1986
        %v1988 = vrot.slane %v1987, 1
        %v1989 = vmax.f32 %v1987, %v1988
        %v1990 = vsub.f32 %v1979, %v1989
        %v1991 = vsub.f32 %v1980, %v1989
        %v1992 = vmul.f32 %v1990, 1.442695
        %v1993 = vpow.pop %v1992
        %v1994 = vmul.f32 %v1991, 1.442695
        %v1995 = vpow.pop %v1994
        %v1996 = vsel %vm1946, %v1993, 0.0
        %v1997 = vsel %vm1946, %v1995, 0.0
        %v1998 = vadd.f32 %v1996, %v1997
        %v1999 = vrot.slane %v1998, 4
        %v2000 = vadd.f32 %v1998, %v1999
        %v2001 = vrot.slane %v2000, 2
        %v2002 = vadd.f32 %v2000, %v2001
        %v2003 = vrot.slane %v2002, 1
        %v2004 = vadd.f32 %v2002, %v2003
        %v2005 = vrcp.pop %v2004
        %v2006 = vmul.f32 %v1993, %v2005
        %v2007 = vmul.f32 %v1995, %v2005
        %v2008 = vmul.f32 %v1939, %v2006
        %v2009 = vmul.f32 %v1942, %v2007
        %v2010 = vld [vmem:[#allocation10] sm:$0xff]
        %v2011 = vld [vmem:[#allocation10 + $0x8] sm:$0xff]
        %v2012 = vld [vmem:[#allocation10 + $0x10] sm:$0x1]
        %v2013 = vld [vmem:[#allocation10 + $0x18] sm:$0x1]
        %v2015 = vsel %vm1946, %v2008, 0
        %v2018 = vsel %vm1946, %v2009, 0
        %v2021 = vsel %vm1560, %v2012, 0
        %v2024 = vsel %vm1560, %v2013, 0
        %2026 = vmatpush.msra.mxu0 0.0
        %2027 = vmatpush.msra.mxu0 0.0
        %2028 = vmatpush.msra.mxu0 0.0
        %2029 = vmatpush.msra.mxu0 0.0
        %2030 = vmatpush.msra.mxu0 0.0
        %2031 = vmatpush.msra.mxu0 0.0
        %2032 = vmatpush.msra.mxu0 0.0
        %2033 = vmatpush.msra.mxu0 0.0
        %2034 = vmatpush.msra.mxu0 0.0
        %2035 = vmatpush.msra.mxu0 0.0
        %2036 = vmatpush.msra.mxu0 0.0
        %2037 = vmatpush.msra.mxu0 0.0
        %2038 = vmatpush.msra.mxu0 0.0
        %2039 = vmatpush.msra.mxu0 0.0
        %2040 = vmatpush.msra.mxu0 %v2021
        %2041 = vmatpush.msra.mxu0 %v2010
        %2042 = vmatmul.f32.gmra.mxu0 %v2015
        %v2043 = vpop.f32.mrf.mxu0
        %v2044 = vadd.f32 0.0, %v2043
        %2045 = vmatmul.f32.gmra.mxu0 %v2018
        %v2046 = vpop.f32.mrf.mxu0
        %v2047 = vadd.f32 0.0, %v2046
        %2048 = vdwg.mxu0
        %2049 = vmatpush.msra.mxu0 0.0
        %2050 = vmatpush.msra.mxu0 0.0
        %2051 = vmatpush.msra.mxu0 0.0
        %2052 = vmatpush.msra.mxu0 0.0
        %2053 = vmatpush.msra.mxu0 0.0
        %2054 = vmatpush.msra.mxu0 0.0
        %2055 = vmatpush.msra.mxu0 0.0
        %2056 = vmatpush.msra.mxu0 0.0
        %2057 = vmatpush.msra.mxu0 0.0
        %2058 = vmatpush.msra.mxu0 0.0
        %2059 = vmatpush.msra.mxu0 0.0
        %2060 = vmatpush.msra.mxu0 0.0
        %2061 = vmatpush.msra.mxu0 0.0
        %2062 = vmatpush.msra.mxu0 0.0
        %2063 = vmatpush.msra.mxu0 %v2024
        %2064 = vmatpush.msra.mxu0 %v2011
        %2065 = vmatmul.f32.gmra.mxu0 %v2015
        %v2066 = vpop.f32.mrf.mxu0
        %v2067 = vadd.f32 0.0, %v2066
        %2068 = vmatmul.f32.gmra.mxu0 %v2018
        %v2069 = vpop.f32.mrf.mxu0
        %v2070 = vadd.f32 0.0, %v2069
        %2071 = vdwg.mxu0
        %v2072 = vadd.f32 %v807, %v2044
        %v2073 = vadd.f32 %v808, %v2067
        %v2074 = vadd.f32 %v809, %v2047
        %v2075 = vadd.f32 %v810, %v2070
        %2076 = vst [vmem:[%s806] sm:$0xff] %v2072
        %2077 = vst [vmem:[%s806 + $0x8] sm:$0xff] %v2073
        %2078 = vst [vmem:[%s806 + $0x10] sm:$0xff] %v2074
        %2079 = vst [vmem:[%s806 + $0x18] sm:$0xff] %v2075
        %p2080 = scmp.lt.s32.totalorder %s37, 1
        %s2081 = scalar_select %p2080, %s37, 1
        %s2082 = smul.addr %s2081, 4
        %s2083 = smul.addr %s2082, 8
        %s2084 = scalar_lea.vmem %s20, %s2083
        %p2085 = scmp.lt.s32.totalorder %s37, 1
        %s2086 = scalar_select %p2085, %s37, 1
        %s2087 = smul.addr %s2086, 4
        %s2088 = smul.addr %s2087, 8
        %s2089 = scalar_lea.vmem %s21, %s2088
        // Predicated region
        $region125: #{dual_attention_forward.1} parent=99 // pred_check
          %p2090 = pneg %p490
        $region126: #{dual_attention_forward.1} parent=99 // pred_check_branch
          %2092 = sbr.rel (%p2090) target = $region128
        $region127: #{dual_attention_forward.1} parent=99 // pred_region
          _
        $region128: #{dual_attention_forward.1} parent=99 // pred_fallthru
          _
        // Predicated region
        $region129: #{dual_attention_forward.1} parent=99 // pred_check
          %p2093 = pneg %p516
        $region130: #{dual_attention_forward.1} parent=99 // pred_check_branch
          %2095 = sbr.rel (%p2093) target = $region132
        $region131: #{dual_attention_forward.1} parent=99 // pred_region
          _
        $region132: #{dual_attention_forward.1} parent=99 // pred_fallthru
          _
      $region100: #{dual_attention_forward.1} parent=5 // pred_fallthru
        _
      %p2096 = scmp.le.s32.totalorder 2, %s32
      // Predicated region
      $region133: #{dual_attention_forward.1} parent=5 // pred_check
        %p2097 = pneg %p2096
      $region134: #{dual_attention_forward.1} parent=5 // pred_check_branch
        %2099 = sbr.rel (%p2097) target = $region136
      $region135: #{dual_attention_forward.1} parent=5 // pred_region
        %s2100 = ssub.s32 %s32, 2
        // Predicated region
        $region137: #{dual_attention_forward.1} parent=135 // pred_check
          %p2101 = pneg %p496
        $region138: #{dual_attention_forward.1} parent=135 // pred_check_branch
          %2103 = sbr.rel (%p2101) target = $region140
        $region139: #{dual_attention_forward.1} parent=135 // pred_region
          %p2104 = scmp.lt.s32.totalorder %s38, 1
          %s2105 = scalar_select %p2104, %s38, 1
          %s2106 = smul.addr %s2105, 4
          %s2107 = smul.addr %s2106, 8
          %s2108 = scalar_lea.vmem %s20, %s2107
        $region140: #{dual_attention_forward.1} parent=135 // pred_fallthru
          _
        // Predicated region
        $region141: #{dual_attention_forward.1} parent=135 // pred_check
          %p2109 = pneg %p522
        $region142: #{dual_attention_forward.1} parent=135 // pred_check_branch
          %2111 = sbr.rel (%p2109) target = $region144
        $region143: #{dual_attention_forward.1} parent=135 // pred_region
          %p2112 = scmp.lt.s32.totalorder %s38, 1
          %s2113 = scalar_select %p2112, %s38, 1
          %s2114 = smul.addr %s2113, 4
          %s2115 = smul.addr %s2114, 8
          %s2116 = scalar_lea.vmem %s21, %s2115
        $region144: #{dual_attention_forward.1} parent=135 // pred_fallthru
          _
      $region136: #{dual_attention_forward.1} parent=5 // pred_fallthru
        _
    $region6: #{dual_attention_forward.1} parent=1 // loop_footer
      %s36 = sadd.s32 1, %s32
    $region7: #{dual_attention_forward.1} parent=1 // loop_footer_branch
      %31 = sbr.rel target = $region3
    $region8: #{dual_attention_forward.1} parent=1 // loop_exit
      _
    %2117 = vsyncpa [#allocation3], 1
    %s2118 = scalar_lea.sflag [#allocation3], 1
    %2119 = vsyncpa %s2118, 1
    %2120 = vsyncpa [#allocation5], 1
    %2121 = vsyncpa [#allocation8], 1
    %2122 = vsyncpa [#allocation11], 1

</llo_original>
